<compile_context>
chip_gen: v7x
topology: tpu7x:2x2x1
jax: 0.10.0
libtpu: 0.0.40
codegen_flags: <defaults>
</compile_context>

<pallas_src>
import functools

import numpy as np
import jax
import jax.numpy as jnp
from jax.experimental import pallas as pl
from jax.experimental.pallas import tpu as pltpu

OUT_PAD = 128  # lane width of the logits slab (full vreg lane width -> unmasked store)


def _ceil128(v):
    return ((v + 127) // 128) * 128


# ------------------------------ fused kernel --------------------------------

def _fused_kernel(x_ref, w0_ref, wbig_ref, wt_ref, bias_ref, mp_ref, o_ref, *,
                  hidden_dim, n1, n2, d_model, d_ff, num_heads, head_dim, tb, seq):
    """Whole forward pass for one batch tile of `tb` samples."""
    f32 = jnp.float32
    bf16 = jnp.bfloat16
    eps = 1e-5
    S = tb * seq          # stacked (sample, position) rows for the transformer
    c2 = d_model

    # static lane offsets inside the packed weight slabs (host uses same layout)
    wf2_off = 2 * n2
    w1b_off = wf2_off + _ceil128(d_model)
    qkv_off = 0
    wo_off = qkv_off + _ceil128(3 * d_model)
    wf1_off = wo_off + _ceil128(d_model)
    wc_off = wf1_off + _ceil128(d_ff)

    def brow(i, width):                      # (1, width) slice of the bias slab
        return bias_ref[i:i + 1, 0:width]

    def layernorm(v, g, b):                  # single-pass: var = E[x^2] - mean^2
        mu = jnp.mean(v, axis=-1, keepdims=True)
        ms = jnp.mean(v * v, axis=-1, keepdims=True)
        return (v - mu) * jax.lax.rsqrt(ms - mu * mu + eps) * g + b

    # ---- dim_reduction: Linear + ReLU ------------------------------ (TB, hidden)
    # TODO(synk): K-tile W0 (grid reduction axis + VMEM accumulator) once input_dim
    #             reaches realistic SNP scale; at toy sizes a single block is fine.
    x = x_ref[...]
    h = jnp.dot(x, w0_ref[...], preferred_element_type=f32) + brow(6, hidden_dim)
    h = jnp.maximum(h, 0.0)

    # ---- feature_selection: Conv1d(1->C1,k5,s2,p2) -> ReLU -> BN ----- (TB, N1)
    w1b = wbig_ref[0:hidden_dim, w1b_off:w1b_off + n1]
    c1 = jnp.dot(h.astype(bf16), w1b, preferred_element_type=f32) + brow(0, n1)
    x1 = jnp.maximum(c1, 0.0) * brow(1, n1) + brow(2, n1)

    # ---- feature_extraction + residual, ONE fused matmul ------------ (TB, N2)
    # lanes [0:n2) = conv2 Toeplitz, lanes [n2:2*n2) = avg-pool residual (ch-padded)
    cp = jnp.dot(x1.astype(bf16), wbig_ref[:, 0:2 * n2], preferred_element_type=f32)
    conv = cp[:, 0:n2] + brow(3, n2)
    x2 = jnp.maximum(conv, 0.0) * brow(4, n2) + brow(5, n2) + cp[:, n2:2 * n2]

    # ---- flat (TB, L2*C2) -> stacked (TB*L2, C2); row r = sample (r % TB) ----
    z = jnp.concatenate([x2[:, j * c2:(j + 1) * c2] for j in range(seq)], axis=0)

    # ---- TransformerEncoderLayer (norm_first, eval: dropout = identity) ------
    neg = mp_ref[0:S, :]                      # (S, S) block-diag additive mask
    y = layernorm(z, brow(7, d_model), brow(8, d_model))
    qkv = jnp.dot(y, wt_ref[:, qkv_off:qkv_off + 3 * d_model],
                  preferred_element_type=f32) + brow(11, 3 * d_model)
    wo = wt_ref[:, wo_off:wo_off + d_model]
    inv_sqrt_hd = 1.0 / (head_dim ** 0.5)
    attn = brow(12, d_model)                  # out-proj bias, broadcasts over rows
    for hh in range(num_heads):
        qh = qkv[:, hh * head_dim:(hh + 1) * head_dim]
        kh = qkv[:, d_model + hh * head_dim:d_model + (hh + 1) * head_dim]
        vh = qkv[:, 2 * d_model + hh * head_dim:2 * d_model + (hh + 1) * head_dim]
        s = jax.lax.dot_general(qh, kh, (((1,), (1,)), ((), ())),
                                preferred_element_type=f32) * inv_sqrt_hd + neg
        s = s - jnp.max(s, axis=-1, keepdims=True)
        p = jnp.exp(s)
        p = p * pl.reciprocal(jnp.sum(p, axis=-1, keepdims=True), approx=True)
        oh = jnp.dot(p, vh, preferred_element_type=f32)
        attn = attn + jnp.dot(oh, wo[hh * head_dim:(hh + 1) * head_dim, :],
                              preferred_element_type=f32)
    xt = z + attn

    y2 = layernorm(xt, brow(9, d_model), brow(10, d_model))
    ff = jnp.dot(y2, wt_ref[:, wf1_off:wf1_off + d_ff],
                 preferred_element_type=f32) + brow(13, d_ff)
    ff = jnp.maximum(ff, 0.0)
    wf2 = wbig_ref[0:d_ff, wf2_off:wf2_off + d_model]
    xt = xt + jnp.dot(ff.astype(bf16), wf2, preferred_element_type=f32) + brow(14, d_model)

    # ---- per-sample mean over sequence + classifier --------------------------
    pool = mp_ref[S:S + tb, :]                # (TB, S) constant pooling matrix
    pooled = jnp.dot(pool, xt, preferred_element_type=f32)        # (TB, d_model)
    logits = jnp.dot(pooled, wt_ref[:, wc_off:wc_off + OUT_PAD],
                     preferred_element_type=f32) + bias_ref[15:16, 0:OUT_PAD]
    o_ref[...] = logits                                           # (TB, OUT_PAD)


# -------------------------------- wrapper ------------------------------------

def snp_trait_forward(x, weights, cfg, *, tb=8):
    assert tb % 8 == 0
    B = x.shape[0]
    nt = pl.cdiv(B, tb)
    bp = nt * tb
    xp = jnp.pad(x.astype(jnp.float32), ((0, bp - B), (0, 0)))

    kern = functools.partial(
        _fused_kernel,
        hidden_dim=cfg["hidden_dim"], n1=cfg["n1"], n2=cfg["n2"],
        d_model=cfg["d_model"], d_ff=cfg["d_ff"],
        num_heads=cfg["num_heads"], head_dim=cfg["head_dim"],
        tb=tb, seq=cfg["seq"])

    def const_spec(a):
        zeros = (0,) * a.ndim
        return pl.BlockSpec(a.shape, lambda t: zeros)

    out = pl.pallas_call(
        kern,
        grid=(nt,),
        in_specs=[pl.BlockSpec((tb, cfg["input_dim"]), lambda t: (t, 0))]
                 + [const_spec(w) for w in weights],
        out_specs=pl.BlockSpec((tb, OUT_PAD), lambda t: (t, 0)),
        out_shape=jax.ShapeDtypeStruct((bp, OUT_PAD), jnp.float32),
        compiler_params=pltpu.CompilerParams(dimension_semantics=("parallel",)),
    )(xp, *weights)
    return out[:B, :cfg["output_dim"]]


# --------------------------------- main --------------------------------------

if __name__ == "__main__":
    B = 2
    TB = 8                                    # samples per grid step (batch tile)
    input_dim, hidden_dim, output_dim = 32, 32, 4
    hidden_size, num_heads = 16, 2
    C1, C2 = hidden_size, 2 * hidden_size
    d_model, d_ff = C2, 4 * hidden_size
    head_dim = d_model // num_heads
    eps_bn = 1e-5

    # conv geometry (sequence fed to conv1 has length hidden_dim)
    L0 = hidden_dim
    L1 = (L0 + 2 * 2 - 5) // 2 + 1            # 16
    L2 = (L1 + 2 * 1 - 3) // 2 + 1            # 8
    N1, N2 = L1 * C1, L2 * C2                 # 256, 256
    S = TB * L2                               # stacked transformer rows = 64

    keys = iter(jax.random.split(jax.random.PRNGKey(0), 40))

    def rnd(shape, scale=0.05):
        return np.asarray(scale * jax.random.normal(next(keys), shape), dtype=np.float32)

    # ---- raw module parameters (Linear/attention weights stored as (in, out)) ----
    W0 = rnd((input_dim, hidden_dim)); b0 = rnd((hidden_dim,))
    W1 = rnd((C1, 1, 5)); b1 = rnd((C1,))                     # PyTorch conv layout (O, I, K)
    bn1_g = 1.0 + rnd((C1,)); bn1_b = rnd((C1,))
    bn1_rm = np.zeros((C1,), np.float32); bn1_rv = np.ones((C1,), np.float32)
    W2 = rnd((C2, C1, 3)); b2 = rnd((C2,))
    bn2_g = 1.0 + rnd((C2,)); bn2_b = rnd((C2,))
    bn2_rm = np.zeros((C2,), np.float32); bn2_rv = np.ones((C2,), np.float32)
    Wq, Wk, Wv = rnd((d_model, d_model)), rnd((d_model, d_model)), rnd((d_model, d_model))
    bq, bk, bv = rnd((d_model,)), rnd((d_model,)), rnd((d_model,))
    Wo = rnd((d_model, d_model)); bo = rnd((d_model,))
    ln1_g = 1.0 + rnd((d_model,)); ln1_b = rnd((d_model,))
    ln2_g = 1.0 + rnd((d_model,)); ln2_b = rnd((d_model,))
    Wf1 = rnd((d_model, d_ff)); bf1 = rnd((d_ff,))
    Wf2 = rnd((d_ff, d_model)); bf2 = rnd((d_model,))
    Wc = rnd((d_model, output_dim)); bc = rnd((output_dim,))

    # ---- fold BatchNorm (eval, running stats) into per-channel scale/shift ----
    scale1 = bn1_g / np.sqrt(bn1_rv + eps_bn); shift1 = bn1_b - bn1_rm * scale1
    scale2 = bn2_g / np.sqrt(bn2_rv + eps_bn); shift2 = bn2_b - bn2_rm * scale2

    # ---- structural matrices (built once, host-side) ----
    # conv1 Toeplitz: out_flat[l1*C1 + c] = sum_k W1[c,0,k] * h[2*l1 + k - 2]
    W1big = np.zeros((L0, N1), np.float32)
    for l in range(L1):
        for k in range(5):
            i = 2 * l + k - 2
            if 0 <= i < L0:
                W1big[i, l * C1:(l + 1) * C1] += W1[:, 0, k]

    # conv2 Toeplitz: out_flat[l2*C2 + co] = sum_{k,ci} W2[co,ci,k] * x1[2*l2+k-1, ci]
    W2big = np.zeros((N1, N2), np.float32)
    for l2 in range(L2):
        for k in range(3):
            l1 = 2 * l2 + k - 1
            if 0 <= l1 < L1:
                W2big[l1 * C1:(l1 + 1) * C1, l2 * C2:(l2 + 1) * C2] += W2[:, :, k].T

    # residual path: adaptive_avg_pool1d(L1 -> L2) then zero-pad channels C1 -> C2
    Pident = np.zeros((N1, N2), np.float32)
    for l2 in range(L2):
        s_, e_ = (l2 * L1) // L2, -(-((l2 + 1) * L1) // L2)
        w = 1.0 / (e_ - s_)
        for l1 in range(s_, e_):
            Pident[l1 * C1:(l1 + 1) * C1, l2 * C2:l2 * C2 + C1] += w * np.eye(C1, dtype=np.float32)

    # ---- packed bf16 slab: [conv2-Toeplitz | residual-proj | FFN-W2 | conv1-Toeplitz]
    wf2_off = 2 * N2
    w1b_off = wf2_off + _ceil128(d_model)
    wbig_rows = ((max(N1, d_ff, L0) + 15) // 16) * 16
    wbig = np.zeros((wbig_rows, w1b_off + _ceil128(N1)), np.float32)
    wbig[:N1, 0:N2] = W2big
    wbig[:N1, N2:2 * N2] = Pident
    wbig[:d_ff, wf2_off:wf2_off + d_model] = Wf2
    wbig[:L0, w1b_off:w1b_off + N1] = W1big
    wbig = jnp.asarray(wbig, dtype=jnp.bfloat16)

    # ---- packed f32 slab: transformer + classifier matrices (128-aligned segments)
    qkv_off = 0
    wo_off = qkv_off + _ceil128(3 * d_model)
    wf1_off = wo_off + _ceil128(d_model)
    wc_off = wf1_off + _ceil128(d_ff)
    wt = np.zeros((d_model, wc_off + OUT_PAD), np.float32)
    wt[:, qkv_off:qkv_off + 3 * d_model] = np.concatenate([Wq, Wk, Wv], axis=1)
    wt[:, wo_off:wo_off + d_model] = Wo
    wt[:, wf1_off:wf1_off + d_ff] = Wf1
    wt[:, wc_off:wc_off + output_dim] = Wc
    wt = jnp.asarray(wt)

    # ---- one slab for all small bias / norm / folded-BN vectors ----
    VW = _ceil128(max(N1, N2, 3 * d_model, d_ff, OUT_PAD))
    bias = np.zeros((16, VW), np.float32)
    bias[0, :N1] = np.tile(b1, L1); bias[1, :N1] = np.tile(scale1, L1); bias[2, :N1] = np.tile(shift1, L1)
    bias[3, :N2] = np.tile(b2, L2); bias[4, :N2] = np.tile(scale2, L2); bias[5, :N2] = np.tile(shift2, L2)
    bias[6, :hidden_dim] = b0
    bias[7, :d_model] = ln1_g; bias[8, :d_model] = ln1_b
    bias[9, :d_model] = ln2_g; bias[10, :d_model] = ln2_b
    bias[11, :3 * d_model] = np.concatenate([bq, bk, bv])
    bias[12, :d_model] = bo
    bias[13, :d_ff] = bf1
    bias[14, :d_model] = bf2
    bias[15, :output_dim] = bc
    bias = jnp.asarray(bias)

    # ---- block-diagonal attention mask + per-sample mean-pool matrix ----
    # stacked row r belongs to sample (r % TB), sequence position (r // TB)
    mp = np.zeros((S + TB, S), np.float32)
    rr = np.arange(S)
    same = (rr[:, None] % TB) == (rr[None, :] % TB)
    mp[:S, :] = np.where(same, 0.0, -1e30)
    for b in range(TB):
        mp[S + b, rr % TB == b] = 1.0 / L2
    mp = jnp.asarray(mp)

    weights = [jnp.asarray(W0), wbig, wt, bias, mp]

    cfg = dict(input_dim=input_dim, hidden_dim=hidden_dim, output_dim=output_dim,
               n1=N1, n2=N2, d_model=d_model, d_ff=d_ff,
               num_heads=num_heads, head_dim=head_dim, seq=L2)

    x_in = jax.random.normal(jax.random.PRNGKey(0), (B, input_dim), dtype=jnp.float32)

    logits = snp_trait_forward(x_in, weights, cfg, tb=TB)
    logits = jax.block_until_ready(logits)

    assert logits.shape == (B, output_dim)
    assert bool(jnp.all(jnp.isfinite(logits)))
    print("KERNEL_OK")
</pallas_src>

<mosaic_0001>
module attributes {stable_mosaic.version = 11 : i64} {
  func.func @_fused_kernel(%arg0: i32, %arg1: memref<8x32xf32, #tpu.memory_space<vmem>>, %arg2: memref<32x32xf32, #tpu.memory_space<vmem>>, %arg3: memref<256x896xbf16, #tpu.memory_space<vmem>>, %arg4: memref<32x512xf32, #tpu.memory_space<vmem>>, %arg5: memref<16x256xf32, #tpu.memory_space<vmem>>, %arg6: memref<72x64xf32, #tpu.memory_space<vmem>>, %arg7: memref<8x128xf32, #tpu.memory_space<vmem>>) attributes {dimension_semantics = [#tpu.dimension_semantics<parallel>], iteration_bounds = array<i64: 1>, scalar_prefetch = 0 : i64, scratch_operands = 0 : i64, tpu.core_type = #tpu.core_type<tc>, window_params = [{transform_indices = @transform_0, window_bounds = array<i64: 8, 32>}, {pipeline_mode = #tpu.pipeline_mode<synchronous>, transform_indices = @transform_1, window_bounds = array<i64: 32, 32>}, {pipeline_mode = #tpu.pipeline_mode<synchronous>, transform_indices = @transform_2, window_bounds = array<i64: 256, 896>}, {pipeline_mode = #tpu.pipeline_mode<synchronous>, transform_indices = @transform_3, window_bounds = array<i64: 32, 512>}, {pipeline_mode = #tpu.pipeline_mode<synchronous>, transform_indices = @transform_4, window_bounds = array<i64: 16, 256>}, {pipeline_mode = #tpu.pipeline_mode<synchronous>, transform_indices = @transform_5, window_bounds = array<i64: 72, 64>}, {transform_indices = @transform_6, window_bounds = array<i64: 8, 128>}]} {
    %c0 = arith.constant 0 : index
    %c0_0 = arith.constant 0 : index
    %0 = vector.load %arg1[%c0, %c0_0] : memref<8x32xf32, #tpu.memory_space<vmem>>, vector<8x32xf32>
    %c0_1 = arith.constant 0 : index
    %c0_2 = arith.constant 0 : index
    %1 = vector.load %arg2[%c0_1, %c0_2] : memref<32x32xf32, #tpu.memory_space<vmem>>, vector<32x32xf32>
    %cst = arith.constant dense<0.000000e+00> : vector<8x32xf32>
    %2 = tpu.matmul %0, %1, %cst {dimension_numbers = #tpu.dot_dimension_numbers<[1], [0], [0], [1], [0, 0, 1, 1], [], []>} : vector<8x32xf32>, vector<32x32xf32>, vector<8x32xf32> -> vector<8x32xf32>
    %c6 = arith.constant 6 : index
    %c0_3 = arith.constant 0 : index
    %3 = vector.load %arg5[%c6, %c0_3] : memref<16x256xf32, #tpu.memory_space<vmem>>, vector<1x32xf32>
    %4 = vector.broadcast %3 : vector<1x32xf32> to vector<8x32xf32>
    %5 = arith.addf %2, %4 : vector<8x32xf32>
    %cst_4 = arith.constant 0.000000e+00 : f32
    %6 = vector.broadcast %cst_4 : f32 to vector<8x32xf32>
    %7 = arith.maximumf %5, %6 : vector<8x32xf32>
    %c0_5 = arith.constant 0 : index
    %c640 = arith.constant 640 : index
    %8 = vector.load %arg3[%c0_5, %c640] : memref<256x896xbf16, #tpu.memory_space<vmem>>, vector<32x256xbf16>
    %9 = arith.truncf %7 : vector<8x32xf32> to vector<8x32xbf16>
    %cst_6 = arith.constant dense<0.000000e+00> : vector<8x256xf32>
    %10 = tpu.matmul %9, %8, %cst_6 {dimension_numbers = #tpu.dot_dimension_numbers<[1], [0], [0], [1], [0, 0, 1, 1], [], []>} : vector<8x32xbf16>, vector<32x256xbf16>, vector<8x256xf32> -> vector<8x256xf32>
    %c0_7 = arith.constant 0 : index
    %c0_8 = arith.constant 0 : index
    %11 = vector.load %arg5[%c0_7, %c0_8] : memref<16x256xf32, #tpu.memory_space<vmem>>, vector<1x256xf32>
    %12 = vector.broadcast %11 : vector<1x256xf32> to vector<8x256xf32>
    %13 = arith.addf %10, %12 : vector<8x256xf32>
    %cst_9 = arith.constant 0.000000e+00 : f32
    %14 = vector.broadcast %cst_9 : f32 to vector<8x256xf32>
    %15 = arith.maximumf %13, %14 : vector<8x256xf32>
    %c1 = arith.constant 1 : index
    %c0_10 = arith.constant 0 : index
    %16 = vector.load %arg5[%c1, %c0_10] : memref<16x256xf32, #tpu.memory_space<vmem>>, vector<1x256xf32>
    %17 = vector.broadcast %16 : vector<1x256xf32> to vector<8x256xf32>
    %18 = arith.mulf %15, %17 : vector<8x256xf32>
    %c2 = arith.constant 2 : index
    %c0_11 = arith.constant 0 : index
    %19 = vector.load %arg5[%c2, %c0_11] : memref<16x256xf32, #tpu.memory_space<vmem>>, vector<1x256xf32>
    %20 = vector.broadcast %19 : vector<1x256xf32> to vector<8x256xf32>
    %21 = arith.addf %18, %20 : vector<8x256xf32>
    %22 = arith.truncf %21 : vector<8x256xf32> to vector<8x256xbf16>
    %c0_12 = arith.constant 0 : index
    %c0_13 = arith.constant 0 : index
    %23 = vector.load %arg3[%c0_12, %c0_13] : memref<256x896xbf16, #tpu.memory_space<vmem>>, vector<256x512xbf16>
    %cst_14 = arith.constant dense<0.000000e+00> : vector<8x512xf32>
    %24 = tpu.matmul %22, %23, %cst_14 {dimension_numbers = #tpu.dot_dimension_numbers<[1], [0], [0], [1], [0, 0, 1, 1], [], []>} : vector<8x256xbf16>, vector<256x512xbf16>, vector<8x512xf32> -> vector<8x512xf32>
    %25 = vector.extract_strided_slice %24 {offsets = [0, 0], sizes = [8, 256], strides = [1, 1]} : vector<8x512xf32> to vector<8x256xf32>
    %c3 = arith.constant 3 : index
    %c0_15 = arith.constant 0 : index
    %26 = vector.load %arg5[%c3, %c0_15] : memref<16x256xf32, #tpu.memory_space<vmem>>, vector<1x256xf32>
    %27 = vector.broadcast %26 : vector<1x256xf32> to vector<8x256xf32>
    %28 = arith.addf %25, %27 : vector<8x256xf32>
    %cst_16 = arith.constant 0.000000e+00 : f32
    %29 = vector.broadcast %cst_16 : f32 to vector<8x256xf32>
    %30 = arith.maximumf %28, %29 : vector<8x256xf32>
    %c4 = arith.constant 4 : index
    %c0_17 = arith.constant 0 : index
    %31 = vector.load %arg5[%c4, %c0_17] : memref<16x256xf32, #tpu.memory_space<vmem>>, vector<1x256xf32>
    %32 = vector.broadcast %31 : vector<1x256xf32> to vector<8x256xf32>
    %33 = arith.mulf %30, %32 : vector<8x256xf32>
    %c5 = arith.constant 5 : index
    %c0_18 = arith.constant 0 : index
    %34 = vector.load %arg5[%c5, %c0_18] : memref<16x256xf32, #tpu.memory_space<vmem>>, vector<1x256xf32>
    %35 = vector.broadcast %34 : vector<1x256xf32> to vector<8x256xf32>
    %36 = arith.addf %33, %35 : vector<8x256xf32>
    %37 = vector.extract_strided_slice %24 {offsets = [0, 256], sizes = [8, 256], strides = [1, 1]} : vector<8x512xf32> to vector<8x256xf32>
    %38 = arith.addf %36, %37 : vector<8x256xf32>
    %39 = vector.extract_strided_slice %38 {offsets = [0, 0], sizes = [8, 32], strides = [1, 1]} : vector<8x256xf32> to vector<8x32xf32>
    %40 = vector.extract_strided_slice %38 {offsets = [0, 32], sizes = [8, 32], strides = [1, 1]} : vector<8x256xf32> to vector<8x32xf32>
    %41 = vector.extract_strided_slice %38 {offsets = [0, 64], sizes = [8, 32], strides = [1, 1]} : vector<8x256xf32> to vector<8x32xf32>
    %42 = vector.extract_strided_slice %38 {offsets = [0, 96], sizes = [8, 32], strides = [1, 1]} : vector<8x256xf32> to vector<8x32xf32>
    %43 = vector.extract_strided_slice %38 {offsets = [0, 128], sizes = [8, 32], strides = [1, 1]} : vector<8x256xf32> to vector<8x32xf32>
    %44 = vector.extract_strided_slice %38 {offsets = [0, 160], sizes = [8, 32], strides = [1, 1]} : vector<8x256xf32> to vector<8x32xf32>
    %45 = vector.extract_strided_slice %38 {offsets = [0, 192], sizes = [8, 32], strides = [1, 1]} : vector<8x256xf32> to vector<8x32xf32>
    %46 = vector.extract_strided_slice %38 {offsets = [0, 224], sizes = [8, 32], strides = [1, 1]} : vector<8x256xf32> to vector<8x32xf32>
    %47 = tpu.concatenate %39, %40, %41, %42, %43, %44, %45, %46 in 0 : vector<8x32xf32>, vector<8x32xf32>, vector<8x32xf32>, vector<8x32xf32>, vector<8x32xf32>, vector<8x32xf32>, vector<8x32xf32>, vector<8x32xf32> -> vector<64x32xf32>
    %c0_19 = arith.constant 0 : index
    %c0_20 = arith.constant 0 : index
    %48 = vector.load %arg6[%c0_19, %c0_20] : memref<72x64xf32, #tpu.memory_space<vmem>>, vector<64x64xf32>
    %c7 = arith.constant 7 : index
    %c0_21 = arith.constant 0 : index
    %49 = vector.load %arg5[%c7, %c0_21] : memref<16x256xf32, #tpu.memory_space<vmem>>, vector<1x32xf32>
    %c8 = arith.constant 8 : index
    %c0_22 = arith.constant 0 : index
    %50 = vector.load %arg5[%c8, %c0_22] : memref<16x256xf32, #tpu.memory_space<vmem>>, vector<1x32xf32>
    %cst_23 = arith.constant dense<0.000000e+00> : vector<64xf32>
    %51 = vector.multi_reduction <add>, %47, %cst_23 [1] : vector<64x32xf32> to vector<64xf32>
    %52 = vector.shape_cast %51 : vector<64xf32> to vector<64x1xf32>
    %cst_24 = arith.constant 3.200000e+01 : f32
    %53 = vector.broadcast %cst_24 : f32 to vector<64x1xf32>
    %54 = arith.divf %52, %53 : vector<64x1xf32>
    %55 = arith.mulf %47, %47 : vector<64x32xf32>
    %cst_25 = arith.constant dense<0.000000e+00> : vector<64xf32>
    %56 = vector.multi_reduction <add>, %55, %cst_25 [1] : vector<64x32xf32> to vector<64xf32>
    %57 = vector.shape_cast %56 : vector<64xf32> to vector<64x1xf32>
    %cst_26 = arith.constant 3.200000e+01 : f32
    %58 = vector.broadcast %cst_26 : f32 to vector<64x1xf32>
    %59 = arith.divf %57, %58 : vector<64x1xf32>
    %60 = vector.broadcast %54 : vector<64x1xf32> to vector<64x32xf32>
    %61 = arith.subf %47, %60 : vector<64x32xf32>
    %62 = arith.mulf %54, %54 : vector<64x1xf32>
    %63 = arith.subf %59, %62 : vector<64x1xf32>
    %cst_27 = arith.constant 9.99999974E-6 : f32
    %64 = vector.broadcast %cst_27 : f32 to vector<64x1xf32>
    %65 = arith.addf %63, %64 : vector<64x1xf32>
    %66 = math.rsqrt %65 : vector<64x1xf32>
    %67 = vector.broadcast %66 : vector<64x1xf32> to vector<64x32xf32>
    %68 = arith.mulf %61, %67 : vector<64x32xf32>
    %69 = vector.broadcast %49 : vector<1x32xf32> to vector<64x32xf32>
    %70 = arith.mulf %68, %69 : vector<64x32xf32>
    %71 = vector.broadcast %50 : vector<1x32xf32> to vector<64x32xf32>
    %72 = arith.addf %70, %71 : vector<64x32xf32>
    %c0_28 = arith.constant 0 : index
    %c0_29 = arith.constant 0 : index
    %73 = vector.load %arg4[%c0_28, %c0_29] : memref<32x512xf32, #tpu.memory_space<vmem>>, vector<32x96xf32>
    %cst_30 = arith.constant dense<0.000000e+00> : vector<64x96xf32>
    %74 = tpu.matmul %72, %73, %cst_30 {dimension_numbers = #tpu.dot_dimension_numbers<[1], [0], [0], [1], [0, 0, 1, 1], [], []>} : vector<64x32xf32>, vector<32x96xf32>, vector<64x96xf32> -> vector<64x96xf32>
    %c11 = arith.constant 11 : index
    %c0_31 = arith.constant 0 : index
    %75 = vector.load %arg5[%c11, %c0_31] : memref<16x256xf32, #tpu.memory_space<vmem>>, vector<1x96xf32>
    %76 = vector.broadcast %75 : vector<1x96xf32> to vector<64x96xf32>
    %77 = arith.addf %74, %76 : vector<64x96xf32>
    %c0_32 = arith.constant 0 : index
    %c128 = arith.constant 128 : index
    %78 = vector.load %arg4[%c0_32, %c128] : memref<32x512xf32, #tpu.memory_space<vmem>>, vector<32x32xf32>
    %c12 = arith.constant 12 : index
    %c0_33 = arith.constant 0 : index
    %79 = vector.load %arg5[%c12, %c0_33] : memref<16x256xf32, #tpu.memory_space<vmem>>, vector<1x32xf32>
    %80 = vector.extract_strided_slice %77 {offsets = [0, 0], sizes = [64, 16], strides = [1, 1]} : vector<64x96xf32> to vector<64x16xf32>
    %81 = vector.extract_strided_slice %77 {offsets = [0, 32], sizes = [64, 16], strides = [1, 1]} : vector<64x96xf32> to vector<64x16xf32>
    %82 = vector.extract_strided_slice %77 {offsets = [0, 64], sizes = [64, 16], strides = [1, 1]} : vector<64x96xf32> to vector<64x16xf32>
    %cst_34 = arith.constant dense<0.000000e+00> : vector<64x64xf32>
    %83 = tpu.matmul %80, %81, %cst_34 {dimension_numbers = #tpu.dot_dimension_numbers<[1], [1], [0], [0], [0, 0, 1, 0], [], []>} : vector<64x16xf32>, vector<64x16xf32>, vector<64x64xf32> -> vector<64x64xf32>
    %cst_35 = arith.constant 2.500000e-01 : f32
    %84 = vector.broadcast %cst_35 : f32 to vector<64x64xf32>
    %85 = arith.mulf %83, %84 : vector<64x64xf32>
    %86 = arith.addf %85, %48 : vector<64x64xf32>
    %cst_36 = arith.constant dense<0xFF800000> : vector<64xf32>
    %87 = vector.multi_reduction <maximumf>, %86, %cst_36 [1] : vector<64x64xf32> to vector<64xf32>
    %88 = vector.shape_cast %87 : vector<64xf32> to vector<64x1xf32>
    %89 = vector.broadcast %88 : vector<64x1xf32> to vector<64x64xf32>
    %90 = arith.subf %86, %89 : vector<64x64xf32>
    %91 = math.exp %90 : vector<64x64xf32>
    %cst_37 = arith.constant dense<0.000000e+00> : vector<64xf32>
    %92 = vector.multi_reduction <add>, %91, %cst_37 [1] : vector<64x64xf32> to vector<64xf32>
    %93 = vector.shape_cast %92 : vector<64xf32> to vector<64x1xf32>
    %94 = tpu.reciprocal %93 {approx = true} : vector<64x1xf32> -> vector<64x1xf32>
    %95 = vector.broadcast %94 : vector<64x1xf32> to vector<64x64xf32>
    %96 = arith.mulf %91, %95 : vector<64x64xf32>
    %cst_38 = arith.constant dense<0.000000e+00> : vector<64x16xf32>
    %97 = tpu.matmul %96, %82, %cst_38 {dimension_numbers = #tpu.dot_dimension_numbers<[1], [0], [0], [1], [0, 0, 1, 1], [], []>} : vector<64x64xf32>, vector<64x16xf32>, vector<64x16xf32> -> vector<64x16xf32>
    %98 = vector.extract_strided_slice %78 {offsets = [0, 0], sizes = [16, 32], strides = [1, 1]} : vector<32x32xf32> to vector<16x32xf32>
    %cst_39 = arith.constant dense<0.000000e+00> : vector<64x32xf32>
    %99 = tpu.matmul %97, %98, %cst_39 {dimension_numbers = #tpu.dot_dimension_numbers<[1], [0], [0], [1], [0, 0, 1, 1], [], []>} : vector<64x16xf32>, vector<16x32xf32>, vector<64x32xf32> -> vector<64x32xf32>
    %100 = vector.broadcast %79 : vector<1x32xf32> to vector<64x32xf32>
    %101 = arith.addf %100, %99 : vector<64x32xf32>
    %102 = vector.extract_strided_slice %77 {offsets = [0, 16], sizes = [64, 16], strides = [1, 1]} : vector<64x96xf32> to vector<64x16xf32>
    %103 = vector.extract_strided_slice %77 {offsets = [0, 48], sizes = [64, 16], strides = [1, 1]} : vector<64x96xf32> to vector<64x16xf32>
    %104 = vector.extract_strided_slice %77 {offsets = [0, 80], sizes = [64, 16], strides = [1, 1]} : vector<64x96xf32> to vector<64x16xf32>
    %cst_40 = arith.constant dense<0.000000e+00> : vector<64x64xf32>
    %105 = tpu.matmul %102, %103, %cst_40 {dimension_numbers = #tpu.dot_dimension_numbers<[1], [1], [0], [0], [0, 0, 1, 0], [], []>} : vector<64x16xf32>, vector<64x16xf32>, vector<64x64xf32> -> vector<64x64xf32>
    %cst_41 = arith.constant 2.500000e-01 : f32
    %106 = vector.broadcast %cst_41 : f32 to vector<64x64xf32>
    %107 = arith.mulf %105, %106 : vector<64x64xf32>
    %108 = arith.addf %107, %48 : vector<64x64xf32>
    %cst_42 = arith.constant dense<0xFF800000> : vector<64xf32>
    %109 = vector.multi_reduction <maximumf>, %108, %cst_42 [1] : vector<64x64xf32> to vector<64xf32>
    %110 = vector.shape_cast %109 : vector<64xf32> to vector<64x1xf32>
    %111 = vector.broadcast %110 : vector<64x1xf32> to vector<64x64xf32>
    %112 = arith.subf %108, %111 : vector<64x64xf32>
    %113 = math.exp %112 : vector<64x64xf32>
    %cst_43 = arith.constant dense<0.000000e+00> : vector<64xf32>
    %114 = vector.multi_reduction <add>, %113, %cst_43 [1] : vector<64x64xf32> to vector<64xf32>
    %115 = vector.shape_cast %114 : vector<64xf32> to vector<64x1xf32>
    %116 = tpu.reciprocal %115 {approx = true} : vector<64x1xf32> -> vector<64x1xf32>
    %117 = vector.broadcast %116 : vector<64x1xf32> to vector<64x64xf32>
    %118 = arith.mulf %113, %117 : vector<64x64xf32>
    %cst_44 = arith.constant dense<0.000000e+00> : vector<64x16xf32>
    %119 = tpu.matmul %118, %104, %cst_44 {dimension_numbers = #tpu.dot_dimension_numbers<[1], [0], [0], [1], [0, 0, 1, 1], [], []>} : vector<64x64xf32>, vector<64x16xf32>, vector<64x16xf32> -> vector<64x16xf32>
    %120 = vector.extract_strided_slice %78 {offsets = [16, 0], sizes = [16, 32], strides = [1, 1]} : vector<32x32xf32> to vector<16x32xf32>
    %cst_45 = arith.constant dense<0.000000e+00> : vector<64x32xf32>
    %121 = tpu.matmul %119, %120, %cst_45 {dimension_numbers = #tpu.dot_dimension_numbers<[1], [0], [0], [1], [0, 0, 1, 1], [], []>} : vector<64x16xf32>, vector<16x32xf32>, vector<64x32xf32> -> vector<64x32xf32>
    %122 = arith.addf %101, %121 : vector<64x32xf32>
    %123 = arith.addf %47, %122 : vector<64x32xf32>
    %c9 = arith.constant 9 : index
    %c0_46 = arith.constant 0 : index
    %124 = vector.load %arg5[%c9, %c0_46] : memref<16x256xf32, #tpu.memory_space<vmem>>, vector<1x32xf32>
    %c10 = arith.constant 10 : index
    %c0_47 = arith.constant 0 : index
    %125 = vector.load %arg5[%c10, %c0_47] : memref<16x256xf32, #tpu.memory_space<vmem>>, vector<1x32xf32>
    %cst_48 = arith.constant dense<0.000000e+00> : vector<64xf32>
    %126 = vector.multi_reduction <add>, %123, %cst_48 [1] : vector<64x32xf32> to vector<64xf32>
    %127 = vector.shape_cast %126 : vector<64xf32> to vector<64x1xf32>
    %cst_49 = arith.constant 3.200000e+01 : f32
    %128 = vector.broadcast %cst_49 : f32 to vector<64x1xf32>
    %129 = arith.divf %127, %128 : vector<64x1xf32>
    %130 = arith.mulf %123, %123 : vector<64x32xf32>
    %cst_50 = arith.constant dense<0.000000e+00> : vector<64xf32>
    %131 = vector.multi_reduction <add>, %130, %cst_50 [1] : vector<64x32xf32> to vector<64xf32>
    %132 = vector.shape_cast %131 : vector<64xf32> to vector<64x1xf32>
    %cst_51 = arith.constant 3.200000e+01 : f32
    %133 = vector.broadcast %cst_51 : f32 to vector<64x1xf32>
    %134 = arith.divf %132, %133 : vector<64x1xf32>
    %135 = vector.broadcast %129 : vector<64x1xf32> to vector<64x32xf32>
    %136 = arith.subf %123, %135 : vector<64x32xf32>
    %137 = arith.mulf %129, %129 : vector<64x1xf32>
    %138 = arith.subf %134, %137 : vector<64x1xf32>
    %cst_52 = arith.constant 9.99999974E-6 : f32
    %139 = vector.broadcast %cst_52 : f32 to vector<64x1xf32>
    %140 = arith.addf %138, %139 : vector<64x1xf32>
    %141 = math.rsqrt %140 : vector<64x1xf32>
    %142 = vector.broadcast %141 : vector<64x1xf32> to vector<64x32xf32>
    %143 = arith.mulf %136, %142 : vector<64x32xf32>
    %144 = vector.broadcast %124 : vector<1x32xf32> to vector<64x32xf32>
    %145 = arith.mulf %143, %144 : vector<64x32xf32>
    %146 = vector.broadcast %125 : vector<1x32xf32> to vector<64x32xf32>
    %147 = arith.addf %145, %146 : vector<64x32xf32>
    %c0_53 = arith.constant 0 : index
    %c256 = arith.constant 256 : index
    %148 = vector.load %arg4[%c0_53, %c256] : memref<32x512xf32, #tpu.memory_space<vmem>>, vector<32x64xf32>
    %cst_54 = arith.constant dense<0.000000e+00> : vector<64x64xf32>
    %149 = tpu.matmul %147, %148, %cst_54 {dimension_numbers = #tpu.dot_dimension_numbers<[1], [0], [0], [1], [0, 0, 1, 1], [], []>} : vector<64x32xf32>, vector<32x64xf32>, vector<64x64xf32> -> vector<64x64xf32>
    %c13 = arith.constant 13 : index
    %c0_55 = arith.constant 0 : index
    %150 = vector.load %arg5[%c13, %c0_55] : memref<16x256xf32, #tpu.memory_space<vmem>>, vector<1x64xf32>
    %151 = vector.broadcast %150 : vector<1x64xf32> to vector<64x64xf32>
    %152 = arith.addf %149, %151 : vector<64x64xf32>
    %cst_56 = arith.constant 0.000000e+00 : f32
    %153 = vector.broadcast %cst_56 : f32 to vector<64x64xf32>
    %154 = arith.maximumf %152, %153 : vector<64x64xf32>
    %c0_57 = arith.constant 0 : index
    %c512 = arith.constant 512 : index
    %155 = vector.load %arg3[%c0_57, %c512] : memref<256x896xbf16, #tpu.memory_space<vmem>>, vector<64x32xbf16>
    %156 = arith.truncf %154 : vector<64x64xf32> to vector<64x64xbf16>
    %cst_58 = arith.constant dense<0.000000e+00> : vector<64x32xf32>
    %157 = tpu.matmul %156, %155, %cst_58 {dimension_numbers = #tpu.dot_dimension_numbers<[1], [0], [0], [1], [0, 0, 1, 1], [], []>} : vector<64x64xbf16>, vector<64x32xbf16>, vector<64x32xf32> -> vector<64x32xf32>
    %158 = arith.addf %123, %157 : vector<64x32xf32>
    %c14 = arith.constant 14 : index
    %c0_59 = arith.constant 0 : index
    %159 = vector.load %arg5[%c14, %c0_59] : memref<16x256xf32, #tpu.memory_space<vmem>>, vector<1x32xf32>
    %160 = vector.broadcast %159 : vector<1x32xf32> to vector<64x32xf32>
    %161 = arith.addf %158, %160 : vector<64x32xf32>
    %c64 = arith.constant 64 : index
    %c0_60 = arith.constant 0 : index
    %162 = vector.load %arg6[%c64, %c0_60] : memref<72x64xf32, #tpu.memory_space<vmem>>, vector<8x64xf32>
    %cst_61 = arith.constant dense<0.000000e+00> : vector<8x32xf32>
    %163 = tpu.matmul %162, %161, %cst_61 {dimension_numbers = #tpu.dot_dimension_numbers<[1], [0], [0], [1], [0, 0, 1, 1], [], []>} : vector<8x64xf32>, vector<64x32xf32>, vector<8x32xf32> -> vector<8x32xf32>
    %c0_62 = arith.constant 0 : index
    %c384 = arith.constant 384 : index
    %164 = vector.load %arg4[%c0_62, %c384] : memref<32x512xf32, #tpu.memory_space<vmem>>, vector<32x128xf32>
    %cst_63 = arith.constant dense<0.000000e+00> : vector<8x128xf32>
    %165 = tpu.matmul %163, %164, %cst_63 {dimension_numbers = #tpu.dot_dimension_numbers<[1], [0], [0], [1], [0, 0, 1, 1], [], []>} : vector<8x32xf32>, vector<32x128xf32>, vector<8x128xf32> -> vector<8x128xf32>
    %c15 = arith.constant 15 : index
    %c0_64 = arith.constant 0 : index
    %166 = vector.load %arg5[%c15, %c0_64] : memref<16x256xf32, #tpu.memory_space<vmem>>, vector<1x128xf32>
    %167 = vector.broadcast %166 : vector<1x128xf32> to vector<8x128xf32>
    %168 = arith.addf %165, %167 : vector<8x128xf32>
    %c0_65 = arith.constant 0 : index
    %c0_66 = arith.constant 0 : index
    %169 = vector.load %arg7[%c0_65, %c0_66] : memref<8x128xf32, #tpu.memory_space<vmem>>, vector<8x128xf32>
    tpu.vector_store %arg7[%c0_65, %c0_66], %168 {strides = array<i32>} : memref<8x128xf32, #tpu.memory_space<vmem>>, vector<8x128xf32>,
    return
  }
  func.func @transform_0(%arg0: i32) -> (i32, i32) {
    %c0_i32 = arith.constant 0 : i32
    %c0_i32_0 = arith.constant 0 : i32
    return %arg0, %c0_i32 : i32, i32
  }
  func.func @transform_1(%arg0: i32) -> (i32, i32) {
    %c0_i32 = arith.constant 0 : i32
    %c0_i32_0 = arith.constant 0 : i32
    %c0_i32_1 = arith.constant 0 : i32
    return %c0_i32, %c0_i32_0 : i32, i32
  }
  func.func @transform_2(%arg0: i32) -> (i32, i32) {
    %c0_i32 = arith.constant 0 : i32
    %c0_i32_0 = arith.constant 0 : i32
    %c0_i32_1 = arith.constant 0 : i32
    return %c0_i32, %c0_i32_0 : i32, i32
  }
  func.func @transform_3(%arg0: i32) -> (i32, i32) {
    %c0_i32 = arith.constant 0 : i32
    %c0_i32_0 = arith.constant 0 : i32
    %c0_i32_1 = arith.constant 0 : i32
    return %c0_i32, %c0_i32_0 : i32, i32
  }
  func.func @transform_4(%arg0: i32) -> (i32, i32) {
    %c0_i32 = arith.constant 0 : i32
    %c0_i32_0 = arith.constant 0 : i32
    %c0_i32_1 = arith.constant 0 : i32
    return %c0_i32, %c0_i32_0 : i32, i32
  }
  func.func @transform_5(%arg0: i32) -> (i32, i32) {
    %c0_i32 = arith.constant 0 : i32
    %c0_i32_0 = arith.constant 0 : i32
    %c0_i32_1 = arith.constant 0 : i32
    return %c0_i32, %c0_i32_0 : i32, i32
  }
  func.func @transform_6(%arg0: i32) -> (i32, i32) {
    %c0_i32 = arith.constant 0 : i32
    %c0_i32_0 = arith.constant 0 : i32
    return %arg0, %c0_i32 : i32, i32
  }
}

</mosaic_0001>

<llo_original>
// kernel: tpu_custom_call.1
$region0: #{tpu_custom_call.1}
  #allocation0 [shape = 'u32[]', space=smem, size = 0x4, offset = 0x4, fixed_abs, tag = 'smem constant byte address 0x4 - core index']
  #allocation1 [shape = 'u32[144,128]{1,0:T(1,128)}', space=vmem, size = 0x12000, scoped, tag = 'internal scratch']
  %s0 = inlined_call_operand.vmem [shape: f32[8,32], index: 0, kind: input, shape index: {}]
  %s1 = inlined_call_operand.hbm [shape: f32[32,32], index: 1, kind: input, shape index: {}]
  %s2 = inlined_call_operand.hbm [shape: bf16[256,896], index: 2, kind: input, shape index: {}]
  %s3 = inlined_call_operand.vmem [shape: f32[32,512], index: 3, kind: input, shape index: {}]
  %s4 = inlined_call_operand.hbm [shape: f32[16,256], index: 4, kind: input, shape index: {}]
  %s5 = inlined_call_operand.vmem [shape: f32[72,64], index: 5, kind: input, shape index: {}]
  %s6 = inlined_call_operand.hbm [shape: f32[8,128], index: 6, kind: output, shape index: {}]
  %s7 = sld [smem:[#allocation0]]
  $region46: #{tpu_custom_call.1} parent=0
    _
  %s9 = ssub.s32 1, %s7
  %s10 = scalar_select 0, %s9, %s7
  $region1: #{tpu_custom_call.1} parent=0
    #allocation2 [shape = 'u8[16384]{0}', space=vmem, size = 0x4000, scoped, tag = 'input window, operand 1, single buffered']
    #allocation3 [shape = 's32[1]{0}', space=sflag, size = 0x4, scoped, tag = 'scoped memory for tpu_custom_call.1']
    #allocation4 [shape = 's32[1]{0}', space=sflag, size = 0x4, scoped, tag = 'scoped memory for tpu_custom_call.1']
    #allocation5 [shape = 'u8[458752]{0}', space=vmem, size = 0x70000, scoped, tag = 'input window, operand 2, single buffered']
    #allocation6 [shape = 's32[1]{0}', space=sflag, size = 0x4, scoped, tag = 'scoped memory for tpu_custom_call.1']
    #allocation7 [shape = 'u8[16384]{0}', space=vmem, size = 0x4000, scoped, tag = 'input window, operand 4, single buffered']
    #allocation8 [shape = 'u8[4096]{0}', space=vmem, size = 0x1000, scoped, tag = 'output window, operand 0, single buffered']
    %11 = vsyncpa [#allocation3], 0
    %12 = vsyncpa [#allocation6], 0
    %13 = vsyncpa [#allocation4], 0
    // Predicated region
    $region2: #{tpu_custom_call.1} parent=1 // pred_check
      _
    $region3: #{tpu_custom_call.1} parent=1 // pred_check_branch
      %15 = sbr.rel (0) target = $region5
    $region4: #{tpu_custom_call.1} parent=1 // pred_region
      _
    $region5: #{tpu_custom_call.1} parent=1 // pred_fallthru
      _
    // Predicated region
    $region6: #{tpu_custom_call.1} parent=1 // pred_check
      _
    $region7: #{tpu_custom_call.1} parent=1 // pred_check_branch
      %17 = sbr.rel (0) target = $region9
    $region8: #{tpu_custom_call.1} parent=1 // pred_region
      %s19 = ssub.s32 512, 512
      %20 = vsyncadd [#allocation3], %s19
      %s21 = sshll.u32 [#allocation2], 4
      %s22 = int_to_ptr.vmem [resolvable:$true] %s21
      %27 = dma.hbm_to_vmem [thread:$0]  %s1, 512, %s22, [#allocation3], 128, 128, 8
    $region9: #{tpu_custom_call.1} parent=1 // pred_fallthru
      _
    // Predicated region
    $region10: #{tpu_custom_call.1} parent=1 // pred_check
      _
    $region11: #{tpu_custom_call.1} parent=1 // pred_check_branch
      %29 = sbr.rel (0) target = $region13
    $region12: #{tpu_custom_call.1} parent=1 // pred_region
      %s31 = ssub.s32 14336, 14336
      %32 = vsyncadd [#allocation6], %s31
      %s33 = sshll.u32 [#allocation5], 4
      %s34 = int_to_ptr.vmem [resolvable:$true] %s33
      %39 = dma.hbm_to_vmem [thread:$0]  %s2, 14336, %s34, [#allocation6], 448, 448, 28
    $region13: #{tpu_custom_call.1} parent=1 // pred_fallthru
      _
    // Predicated region
    $region14: #{tpu_custom_call.1} parent=1 // pred_check
      _
    $region15: #{tpu_custom_call.1} parent=1 // pred_check_branch
      %41 = sbr.rel (0) target = $region17
    $region16: #{tpu_custom_call.1} parent=1 // pred_region
      _
    $region17: #{tpu_custom_call.1} parent=1 // pred_fallthru
      _
    // Predicated region
    $region18: #{tpu_custom_call.1} parent=1 // pred_check
      _
    $region19: #{tpu_custom_call.1} parent=1 // pred_check_branch
      %43 = sbr.rel (0) target = $region21
    $region20: #{tpu_custom_call.1} parent=1 // pred_region
      %s45 = ssub.s32 512, 512
      %46 = vsyncadd [#allocation6], %s45
      %s47 = sshll.u32 [#allocation7], 4
      %s48 = int_to_ptr.vmem [resolvable:$true] %s47
      %53 = dma.hbm_to_vmem [thread:$0]  %s4, 512, %s48, [#allocation6], 256, 256, 16
    $region21: #{tpu_custom_call.1} parent=1 // pred_fallthru
      _
    // Predicated region
    $region22: #{tpu_custom_call.1} parent=1 // pred_check
      _
    $region23: #{tpu_custom_call.1} parent=1 // pred_check_branch
      %55 = sbr.rel (0) target = $region25
    $region24: #{tpu_custom_call.1} parent=1 // pred_region
      _
    $region25: #{tpu_custom_call.1} parent=1 // pred_fallthru
      _
    // Predicated region
    $region26: #{tpu_custom_call.1} parent=1 // pred_check
      _
    $region27: #{tpu_custom_call.1} parent=1 // pred_check_branch
      %57 = sbr.rel (0) target = $region29
    $region28: #{tpu_custom_call.1} parent=1 // pred_region
      %58 = dma.done [#allocation3], 512
    $region29: #{tpu_custom_call.1} parent=1 // pred_fallthru
      _
    // Predicated region
    $region30: #{tpu_custom_call.1} parent=1 // pred_check
      _
    $region31: #{tpu_custom_call.1} parent=1 // pred_check_branch
      %60 = sbr.rel (0) target = $region33
    $region32: #{tpu_custom_call.1} parent=1 // pred_region
      %61 = dma.done [#allocation6], 14336
    $region33: #{tpu_custom_call.1} parent=1 // pred_fallthru
      _
    // Predicated region
    $region34: #{tpu_custom_call.1} parent=1 // pred_check
      _
    $region35: #{tpu_custom_call.1} parent=1 // pred_check_branch
      %63 = sbr.rel (0) target = $region37
    $region36: #{tpu_custom_call.1} parent=1 // pred_region
      %64 = dma.done [#allocation6], 512
    $region37: #{tpu_custom_call.1} parent=1 // pred_fallthru
      _
    %v66 = vld [vmem:[%s0] sm:$0xff]
    %v67 = vld [vmem:[#allocation2] sm:$0xff]
    %v68 = vld [vmem:[#allocation2 + $0x8] sm:$0xff]
    %v69 = vld [vmem:[#allocation2 + $0x10] sm:$0xff]
    %v70 = vld [vmem:[#allocation2 + $0x18] sm:$0xff]
    %v71 = vld [vmem:[#allocation7 + $0x6] ss:$0 sm:$0xff]
    %vm72 = vcmask 261120
    %v74 = vsel %vm72, %v66, 0
    %76 = vmatprep.subr.mxu0 0.0
    %77 = vmatpush1.msra.mxu0 %v67
    %78 = vmatprep.subr.mxu0 0.0
    %79 = vmatpush1.msra.mxu0 %v68
    %80 = vmatprep.subr.mxu0 0.0
    %81 = vmatpush1.msra.mxu0 %v69
    %82 = vmatprep.subr.mxu0 0.0
    %83 = vmatpush1.msra.mxu0 %v70
    %84 = vmatprep.subr.mxu0 0.0
    %85 = vmatpush1.msra.mxu0 0.0
    %86 = vmatprep.subr.mxu0 0.0
    %87 = vmatpush1.msra.mxu0 0.0
    %88 = vmatprep.subr.mxu0 0.0
    %89 = vmatpush1.msra.mxu0 0.0
    %90 = vmatprep.subr.mxu0 0.0
    %91 = vmatpush1.msra.mxu0 0.0
    %92 = vmatprep.subr.mxu0 0.0
    %93 = vmatpush1.msra.mxu0 0.0
    %94 = vmatprep.subr.mxu0 0.0
    %95 = vmatpush1.msra.mxu0 0.0
    %96 = vmatprep.subr.mxu0 0.0
    %97 = vmatpush1.msra.mxu0 0.0
    %98 = vmatprep.subr.mxu0 0.0
    %99 = vmatpush1.msra.mxu0 0.0
    %100 = vmatprep.subr.mxu0 0.0
    %101 = vmatpush1.msra.mxu0 0.0
    %102 = vmatprep.subr.mxu0 0.0
    %103 = vmatpush1.msra.mxu0 0.0
    %104 = vmatprep.subr.mxu0 0.0
    %105 = vmatpush1.msra.mxu0 0.0
    %106 = vmatprep.subr.mxu0 0.0
    %107 = vmatpush1.msra.mxu0 0.0
    %108 = vmatprep.subr.mxu0 0.0
    %109 = vmatpush1.msra.mxu0 0.0
    %110 = vmatprep.subr.mxu0 0.0
    %111 = vmatpush1.msra.mxu0 0.0
    %112 = vmatprep.subr.mxu0 0.0
    %113 = vmatpush1.msra.mxu0 0.0
    %114 = vmatprep.subr.mxu0 0.0
    %115 = vmatpush1.msra.mxu0 0.0
    %116 = vmatprep.subr.mxu0 0.0
    %117 = vmatpush1.msra.mxu0 0.0
    %118 = vmatprep.subr.mxu0 0.0
    %119 = vmatpush1.msra.mxu0 0.0
    %120 = vmatprep.subr.mxu0 0.0
    %121 = vmatpush1.msra.mxu0 0.0
    %122 = vmatprep.subr.mxu0 0.0
    %123 = vmatpush1.msra.mxu0 0.0
    %124 = vmatprep.subr.mxu0 0.0
    %125 = vmatpush1.msra.mxu0 0.0
    %126 = vmatprep.subr.mxu0 0.0
    %127 = vmatpush1.msra.mxu0 0.0
    %128 = vmatprep.subr.mxu0 0.0
    %129 = vmatpush1.msra.mxu0 0.0
    %130 = vmatprep.subr.mxu0 0.0
    %131 = vmatpush1.msra.mxu0 0.0
    %132 = vmatprep.subr.mxu0 0.0
    %133 = vmatpush1.msra.mxu0 0.0
    %134 = vmatprep.subr.mxu0 0.0
    %135 = vmatpush1.msra.mxu0 0.0
    %136 = vmatprep.subr.mxu0 0.0
    %137 = vmatpush1.msra.mxu0 0.0
    %138 = vmatprep.subr.mxu0 0.0
    %139 = vmatpush1.msra.mxu0 0.0
    %140 = vmatprep.mubr.f32.mxu0 0.0
    %141 = vmatmul.mubr.f32.gmra.mrb[0].mxu0 %v74
    %v142 = vpop.f32.mrb[0].mxu0
    %v143 = vadd.f32 %v71, %v142
    %v144 = vpop.f32.mrb[0].mxu0
    %145 = vdwg.mxu0
    %v146 = vmax.f32 %v143, 0.0
    %v147 = vld [vmem:[#allocation5 + $0x14] sm:$0xff]
    %v148 = vld [vmem:[#allocation5 + $0x30] sm:$0xff]
    %v149 = vld [vmem:[#allocation5 + $0x4c] sm:$0xff]
    %v150 = vld [vmem:[#allocation5 + $0x68] sm:$0xff]
    %v151 = vpack.c.bf16 %v146, %v146
    %v152 = vld [vmem:[#allocation7] ss:$8 sm:$0x3]
    %v154 = vlaneseq
    %v155 = vshrl.u32 %v154, 7
    %v156 = vsub.s32 0, %v155
    %v157 = vrot.slane %v152, %v156
    %v158 = vlaneseq
    %v159 = vshrl.u32 %v158, 7
    %v160 = vsub.s32 1, %v159
    %v161 = vrot.slane %v152, %v160
    %v168 = vunpack.c.l.b16 %v147
    %v169 = vunpack.c.h.b16 %v147
    %v170 = vunpack.c.l.b16 %v148
    %v171 = vunpack.c.h.b16 %v148
    %v172 = vunpack.c.l.b16 %v149
    %v173 = vunpack.c.h.b16 %v149
    %v174 = vunpack.c.l.b16 %v150
    %v175 = vunpack.c.h.b16 %v150
    %v176 = vpack.c.b16 %v170, %v168
    %v177 = vpack.c.b16 %v171, %v169
    %v178 = vpack.c.b16 %v174, %v172
    %v179 = vpack.c.b16 %v175, %v173
    %v185 = vsel %vm72, %v151, 0
    %187 = vmatprep.subr.bf16.mxu0 %v177
    %188 = vmatpush1.bf16.msra.mxu0 %v176
    %189 = vmatprep.subr.bf16.mxu0 %v179
    %190 = vmatpush1.bf16.msra.mxu0 %v178
    %191 = vmatprep.subr.bf16.mxu0 0
    %192 = vmatpush1.bf16.msra.mxu0 0
    %193 = vmatprep.subr.bf16.mxu0 0
    %194 = vmatpush1.bf16.msra.mxu0 0
    %195 = vmatprep.subr.bf16.mxu0 0
    %196 = vmatpush1.bf16.msra.mxu0 0
    %197 = vmatprep.subr.bf16.mxu0 0
    %198 = vmatpush1.bf16.msra.mxu0 0
    %199 = vmatprep.subr.bf16.mxu0 0
    %200 = vmatpush1.bf16.msra.mxu0 0
    %201 = vmatprep.subr.bf16.mxu0 0
    %202 = vmatpush1.bf16.msra.mxu0 0
    %203 = vmatprep.subr.bf16.mxu0 0
    %204 = vmatpush1.bf16.msra.mxu0 0
    %205 = vmatprep.subr.bf16.mxu0 0
    %206 = vmatpush1.bf16.msra.mxu0 0
    %207 = vmatprep.subr.bf16.mxu0 0
    %208 = vmatpush1.bf16.msra.mxu0 0
    %209 = vmatprep.subr.bf16.mxu0 0
    %210 = vmatpush1.bf16.msra.mxu0 0
    %211 = vmatprep.subr.bf16.mxu0 0
    %212 = vmatpush1.bf16.msra.mxu0 0
    %213 = vmatprep.subr.bf16.mxu0 0
    %214 = vmatpush1.bf16.msra.mxu0 0
    %215 = vmatprep.subr.bf16.mxu0 0
    %216 = vmatpush1.bf16.msra.mxu0 0
    %217 = vmatprep.subr.bf16.mxu0 0
    %218 = vmatpush1.bf16.msra.mxu0 0
    %219 = vmatprep.mubr.bf16.mxu0 0
    %220 = vmatmul.mubr.bf16.gmra.mrb[0].mxu0 %v185
    %v221 = vpop.f32.mrb[0].mxu0
    %v222 = vadd.f32 %v157, %v221
    %v223 = vpop.f32.mrb[0].mxu0
    %v224 = vadd.f32 %v161, %v223
    %v225 = vpop.f32.mrb[0].mxu0
    %v226 = vpop.f32.mrb[0].mxu0
    %227 = vdwg.mxu0
    %v228 = vmax.f32 %v222, 0.0
    %v229 = vmax.f32 %v224, 0.0
    %s230 = scalar_lea.vmem [#allocation7], 1
    %v231 = vld [vmem:[%s230] ss:$8 sm:$0x3]
    %v233 = vlaneseq
    %v234 = vshrl.u32 %v233, 7
    %v235 = vsub.s32 0, %v234
    %v236 = vrot.slane %v231, %v235
    %v237 = vlaneseq
    %v238 = vshrl.u32 %v237, 7
    %v239 = vsub.s32 1, %v238
    %v240 = vrot.slane %v231, %v239
    %v243 = vmul.f32 %v228, %v236
    %v244 = vmul.f32 %v229, %v240
    %s245 = scalar_lea.vmem [#allocation7], 2
    %v246 = vld [vmem:[%s245] ss:$8 sm:$0x3]
    %v248 = vlaneseq
    %v249 = vshrl.u32 %v248, 7
    %v250 = vsub.s32 0, %v249
    %v251 = vrot.slane %v246, %v250
    %v252 = vlaneseq
    %v253 = vshrl.u32 %v252, 7
    %v254 = vsub.s32 1, %v253
    %v255 = vrot.slane %v246, %v254
    %v258 = vadd.f32 %v243, %v251
    %v259 = vadd.f32 %v244, %v255
    %v260 = vpack.c.bf16 %v258, %v258
    %v261 = vpack.c.bf16 %v259, %v259
    %v262 = vld [vmem:[#allocation5] sm:$0xff]
    %v263 = vld [vmem:[#allocation5 + $0x8] sm:$0xff]
    %v264 = vld [vmem:[#allocation5 + $0x1c] sm:$0xff]
    %v265 = vld [vmem:[#allocation5 + $0x24] sm:$0xff]
    %v266 = vld [vmem:[#allocation5 + $0x38] sm:$0xff]
    %v267 = vld [vmem:[#allocation5 + $0x40] sm:$0xff]
    %v268 = vld [vmem:[#allocation5 + $0x54] sm:$0xff]
    %v269 = vld [vmem:[#allocation5 + $0x5c] sm:$0xff]
    %v270 = vld [vmem:[#allocation5 + $0x70] sm:$0xff]
    %v271 = vld [vmem:[#allocation5 + $0x78] sm:$0xff]
    %v272 = vld [vmem:[#allocation5 + $0x8c] sm:$0xff]
    %v273 = vld [vmem:[#allocation5 + $0x94] sm:$0xff]
    %v274 = vld [vmem:[#allocation5 + $0xa8] sm:$0xff]
    %v275 = vld [vmem:[#allocation5 + $0xb0] sm:$0xff]
    %v276 = vld [vmem:[#allocation5 + $0xc4] sm:$0xff]
    %v277 = vld [vmem:[#allocation5 + $0xcc] sm:$0xff]
    %v278 = vld [vmem:[#allocation5 + $0xe0] sm:$0xff]
    %v279 = vld [vmem:[#allocation5 + $0xe8] sm:$0xff]
    %v280 = vld [vmem:[#allocation5 + $0xfc] sm:$0xff]
    %v281 = vld [vmem:[#allocation5 + $0x104] sm:$0xff]
    %v282 = vld [vmem:[#allocation5 + $0x118] sm:$0xff]
    %v283 = vld [vmem:[#allocation5 + $0x120] sm:$0xff]
    %v284 = vld [vmem:[#allocation5 + $0x134] sm:$0xff]
    %v285 = vld [vmem:[#allocation5 + $0x13c] sm:$0xff]
    %v286 = vld [vmem:[#allocation5 + $0x150] sm:$0xff]
    %v287 = vld [vmem:[#allocation5 + $0x158] sm:$0xff]
    %v288 = vld [vmem:[#allocation5 + $0x16c] sm:$0xff]
    %v289 = vld [vmem:[#allocation5 + $0x174] sm:$0xff]
    %v290 = vld [vmem:[#allocation5 + $0x188] sm:$0xff]
    %v291 = vld [vmem:[#allocation5 + $0x190] sm:$0xff]
    %v292 = vld [vmem:[#allocation5 + $0x1a4] sm:$0xff]
    %v293 = vld [vmem:[#allocation5 + $0x1ac] sm:$0xff]
    %v294 = vld [vmem:[#allocation5 + $0x1c0] sm:$0xff]
    %v295 = vld [vmem:[#allocation5 + $0x1c8] sm:$0xff]
    %v296 = vld [vmem:[#allocation5 + $0x1dc] sm:$0xff]
    %v297 = vld [vmem:[#allocation5 + $0x1e4] sm:$0xff]
    %v298 = vld [vmem:[#allocation5 + $0x1f8] sm:$0xff]
    %v299 = vld [vmem:[#allocation5 + $0x200] sm:$0xff]
    %v300 = vld [vmem:[#allocation5 + $0x214] sm:$0xff]
    %v301 = vld [vmem:[#allocation5 + $0x21c] sm:$0xff]
    %v302 = vld [vmem:[#allocation5 + $0x230] sm:$0xff]
    %v303 = vld [vmem:[#allocation5 + $0x238] sm:$0xff]
    %v304 = vld [vmem:[#allocation5 + $0x24c] sm:$0xff]
    %v305 = vld [vmem:[#allocation5 + $0x254] sm:$0xff]
    %v306 = vld [vmem:[#allocation5 + $0x268] sm:$0xff]
    %v307 = vld [vmem:[#allocation5 + $0x270] sm:$0xff]
    %v308 = vld [vmem:[#allocation5 + $0x284] sm:$0xff]
    %v309 = vld [vmem:[#allocation5 + $0x28c] sm:$0xff]
    %v310 = vld [vmem:[#allocation5 + $0x2a0] sm:$0xff]
    %v311 = vld [vmem:[#allocation5 + $0x2a8] sm:$0xff]
    %v312 = vld [vmem:[#allocation5 + $0x2bc] sm:$0xff]
    %v313 = vld [vmem:[#allocation5 + $0x2c4] sm:$0xff]
    %v314 = vld [vmem:[#allocation5 + $0x2d8] sm:$0xff]
    %v315 = vld [vmem:[#allocation5 + $0x2e0] sm:$0xff]
    %v316 = vld [vmem:[#allocation5 + $0x2f4] sm:$0xff]
    %v317 = vld [vmem:[#allocation5 + $0x2fc] sm:$0xff]
    %v318 = vld [vmem:[#allocation5 + $0x310] sm:$0xff]
    %v319 = vld [vmem:[#allocation5 + $0x318] sm:$0xff]
    %v320 = vld [vmem:[#allocation5 + $0x32c] sm:$0xff]
    %v321 = vld [vmem:[#allocation5 + $0x334] sm:$0xff]
    %v322 = vld [vmem:[#allocation5 + $0x348] sm:$0xff]
    %v323 = vld [vmem:[#allocation5 + $0x350] sm:$0xff]
    %v324 = vld [vmem:[#allocation5 + $0x364] sm:$0xff]
    %v325 = vld [vmem:[#allocation5 + $0x36c] sm:$0xff]
    %v390 = vunpack.c.l.b16 %v262
    %v391 = vunpack.c.h.b16 %v262
    %v392 = vunpack.c.l.b16 %v263
    %v393 = vunpack.c.h.b16 %v263
    %v394 = vunpack.c.l.b16 %v264
    %v395 = vunpack.c.h.b16 %v264
    %v396 = vunpack.c.l.b16 %v265
    %v397 = vunpack.c.h.b16 %v265
    %v398 = vunpack.c.l.b16 %v266
    %v399 = vunpack.c.h.b16 %v266
    %v400 = vunpack.c.l.b16 %v267
    %v401 = vunpack.c.h.b16 %v267
    %v402 = vunpack.c.l.b16 %v268
    %v403 = vunpack.c.h.b16 %v268
    %v404 = vunpack.c.l.b16 %v269
    %v405 = vunpack.c.h.b16 %v269
    %v406 = vunpack.c.l.b16 %v270
    %v407 = vunpack.c.h.b16 %v270
    %v408 = vunpack.c.l.b16 %v271
    %v409 = vunpack.c.h.b16 %v271
    %v410 = vunpack.c.l.b16 %v272
    %v411 = vunpack.c.h.b16 %v272
    %v412 = vunpack.c.l.b16 %v273
    %v413 = vunpack.c.h.b16 %v273
    %v414 = vunpack.c.l.b16 %v274
    %v415 = vunpack.c.h.b16 %v274
    %v416 = vunpack.c.l.b16 %v275
    %v417 = vunpack.c.h.b16 %v275
    %v418 = vunpack.c.l.b16 %v276
    %v419 = vunpack.c.h.b16 %v276
    %v420 = vunpack.c.l.b16 %v277
    %v421 = vunpack.c.h.b16 %v277
    %v422 = vunpack.c.l.b16 %v278
    %v423 = vunpack.c.h.b16 %v278
    %v424 = vunpack.c.l.b16 %v279
    %v425 = vunpack.c.h.b16 %v279
    %v426 = vunpack.c.l.b16 %v280
    %v427 = vunpack.c.h.b16 %v280
    %v428 = vunpack.c.l.b16 %v281
    %v429 = vunpack.c.h.b16 %v281
    %v430 = vunpack.c.l.b16 %v282
    %v431 = vunpack.c.h.b16 %v282
    %v432 = vunpack.c.l.b16 %v283
    %v433 = vunpack.c.h.b16 %v283
    %v434 = vunpack.c.l.b16 %v284
    %v435 = vunpack.c.h.b16 %v284
    %v436 = vunpack.c.l.b16 %v285
    %v437 = vunpack.c.h.b16 %v285
    %v438 = vunpack.c.l.b16 %v286
    %v439 = vunpack.c.h.b16 %v286
    %v440 = vunpack.c.l.b16 %v287
    %v441 = vunpack.c.h.b16 %v287
    %v442 = vunpack.c.l.b16 %v288
    %v443 = vunpack.c.h.b16 %v288
    %v444 = vunpack.c.l.b16 %v289
    %v445 = vunpack.c.h.b16 %v289
    %v446 = vunpack.c.l.b16 %v290
    %v447 = vunpack.c.h.b16 %v290
    %v448 = vunpack.c.l.b16 %v291
    %v449 = vunpack.c.h.b16 %v291
    %v450 = vunpack.c.l.b16 %v292
    %v451 = vunpack.c.h.b16 %v292
    %v452 = vunpack.c.l.b16 %v293
    %v453 = vunpack.c.h.b16 %v293
    %v454 = vunpack.c.l.b16 %v294
    %v455 = vunpack.c.h.b16 %v294
    %v456 = vunpack.c.l.b16 %v295
    %v457 = vunpack.c.h.b16 %v295
    %v458 = vunpack.c.l.b16 %v296
    %v459 = vunpack.c.h.b16 %v296
    %v460 = vunpack.c.l.b16 %v297
    %v461 = vunpack.c.h.b16 %v297
    %v462 = vunpack.c.l.b16 %v298
    %v463 = vunpack.c.h.b16 %v298
    %v464 = vunpack.c.l.b16 %v299
    %v465 = vunpack.c.h.b16 %v299
    %v466 = vunpack.c.l.b16 %v300
    %v467 = vunpack.c.h.b16 %v300
    %v468 = vunpack.c.l.b16 %v301
    %v469 = vunpack.c.h.b16 %v301
    %v470 = vunpack.c.l.b16 %v302
    %v471 = vunpack.c.h.b16 %v302
    %v472 = vunpack.c.l.b16 %v303
    %v473 = vunpack.c.h.b16 %v303
    %v474 = vunpack.c.l.b16 %v304
    %v475 = vunpack.c.h.b16 %v304
    %v476 = vunpack.c.l.b16 %v305
    %v477 = vunpack.c.h.b16 %v305
    %v478 = vunpack.c.l.b16 %v306
    %v479 = vunpack.c.h.b16 %v306
    %v480 = vunpack.c.l.b16 %v307
    %v481 = vunpack.c.h.b16 %v307
    %v482 = vunpack.c.l.b16 %v308
    %v483 = vunpack.c.h.b16 %v308
    %v484 = vunpack.c.l.b16 %v309
    %v485 = vunpack.c.h.b16 %v309
    %v486 = vunpack.c.l.b16 %v310
    %v487 = vunpack.c.h.b16 %v310
    %v488 = vunpack.c.l.b16 %v311
    %v489 = vunpack.c.h.b16 %v311
    %v490 = vunpack.c.l.b16 %v312
    %v491 = vunpack.c.h.b16 %v312
    %v492 = vunpack.c.l.b16 %v313
    %v493 = vunpack.c.h.b16 %v313
    %v494 = vunpack.c.l.b16 %v314
    %v495 = vunpack.c.h.b16 %v314
    %v496 = vunpack.c.l.b16 %v315
    %v497 = vunpack.c.h.b16 %v315
    %v498 = vunpack.c.l.b16 %v316
    %v499 = vunpack.c.h.b16 %v316
    %v500 = vunpack.c.l.b16 %v317
    %v501 = vunpack.c.h.b16 %v317
    %v502 = vunpack.c.l.b16 %v318
    %v503 = vunpack.c.h.b16 %v318
    %v504 = vunpack.c.l.b16 %v319
    %v505 = vunpack.c.h.b16 %v319
    %v506 = vunpack.c.l.b16 %v320
    %v507 = vunpack.c.h.b16 %v320
    %v508 = vunpack.c.l.b16 %v321
    %v509 = vunpack.c.h.b16 %v321
    %v510 = vunpack.c.l.b16 %v322
    %v511 = vunpack.c.h.b16 %v322
    %v512 = vunpack.c.l.b16 %v323
    %v513 = vunpack.c.h.b16 %v323
    %v514 = vunpack.c.l.b16 %v324
    %v515 = vunpack.c.h.b16 %v324
    %v516 = vunpack.c.l.b16 %v325
    %v517 = vunpack.c.h.b16 %v325
    %v518 = vpack.c.b16 %v394, %v390
    %v519 = vpack.c.b16 %v395, %v391
    %v520 = vpack.c.b16 %v396, %v392
    %v521 = vpack.c.b16 %v397, %v393
    %v522 = vpack.c.b16 %v402, %v398
    %v523 = vpack.c.b16 %v403, %v399
    %v524 = vpack.c.b16 %v404, %v400
    %v525 = vpack.c.b16 %v405, %v401
    %v526 = vpack.c.b16 %v410, %v406
    %v527 = vpack.c.b16 %v411, %v407
    %v528 = vpack.c.b16 %v412, %v408
    %v529 = vpack.c.b16 %v413, %v409
    %v530 = vpack.c.b16 %v418, %v414
    %v531 = vpack.c.b16 %v419, %v415
    %v532 = vpack.c.b16 %v420, %v416
    %v533 = vpack.c.b16 %v421, %v417
    %v534 = vpack.c.b16 %v426, %v422
    %v535 = vpack.c.b16 %v427, %v423
    %v536 = vpack.c.b16 %v428, %v424
    %v537 = vpack.c.b16 %v429, %v425
    %v538 = vpack.c.b16 %v434, %v430
    %v539 = vpack.c.b16 %v435, %v431
    %v540 = vpack.c.b16 %v436, %v432
    %v541 = vpack.c.b16 %v437, %v433
    %v542 = vpack.c.b16 %v442, %v438
    %v543 = vpack.c.b16 %v443, %v439
    %v544 = vpack.c.b16 %v444, %v440
    %v545 = vpack.c.b16 %v445, %v441
    %v546 = vpack.c.b16 %v450, %v446
    %v547 = vpack.c.b16 %v451, %v447
    %v548 = vpack.c.b16 %v452, %v448
    %v549 = vpack.c.b16 %v453, %v449
    %v550 = vpack.c.b16 %v458, %v454
    %v551 = vpack.c.b16 %v459, %v455
    %v552 = vpack.c.b16 %v460, %v456
    %v553 = vpack.c.b16 %v461, %v457
    %v554 = vpack.c.b16 %v466, %v462
    %v555 = vpack.c.b16 %v467, %v463
    %v556 = vpack.c.b16 %v468, %v464
    %v557 = vpack.c.b16 %v469, %v465
    %v558 = vpack.c.b16 %v474, %v470
    %v559 = vpack.c.b16 %v475, %v471
    %v560 = vpack.c.b16 %v476, %v472
    %v561 = vpack.c.b16 %v477, %v473
    %v562 = vpack.c.b16 %v482, %v478
    %v563 = vpack.c.b16 %v483, %v479
    %v564 = vpack.c.b16 %v484, %v480
    %v565 = vpack.c.b16 %v485, %v481
    %v566 = vpack.c.b16 %v490, %v486
    %v567 = vpack.c.b16 %v491, %v487
    %v568 = vpack.c.b16 %v492, %v488
    %v569 = vpack.c.b16 %v493, %v489
    %v570 = vpack.c.b16 %v498, %v494
    %v571 = vpack.c.b16 %v499, %v495
    %v572 = vpack.c.b16 %v500, %v496
    %v573 = vpack.c.b16 %v501, %v497
    %v574 = vpack.c.b16 %v506, %v502
    %v575 = vpack.c.b16 %v507, %v503
    %v576 = vpack.c.b16 %v508, %v504
    %v577 = vpack.c.b16 %v509, %v505
    %v578 = vpack.c.b16 %v514, %v510
    %v579 = vpack.c.b16 %v515, %v511
    %v580 = vpack.c.b16 %v516, %v512
    %v581 = vpack.c.b16 %v517, %v513
    %646 = vmatprep.subr.bf16.mxu0 %v519
    %647 = vmatpush1.bf16.msra.mxu0 %v518
    %648 = vmatprep.subr.bf16.mxu0 %v523
    %649 = vmatpush1.bf16.msra.mxu0 %v522
    %650 = vmatprep.subr.bf16.mxu0 %v527
    %651 = vmatpush1.bf16.msra.mxu0 %v526
    %652 = vmatprep.subr.bf16.mxu0 %v531
    %653 = vmatpush1.bf16.msra.mxu0 %v530
    %654 = vmatprep.subr.bf16.mxu0 %v535
    %655 = vmatpush1.bf16.msra.mxu0 %v534
    %656 = vmatprep.subr.bf16.mxu0 %v539
    %657 = vmatpush1.bf16.msra.mxu0 %v538
    %658 = vmatprep.subr.bf16.mxu0 %v543
    %659 = vmatpush1.bf16.msra.mxu0 %v542
    %660 = vmatprep.subr.bf16.mxu0 %v547
    %661 = vmatpush1.bf16.msra.mxu0 %v546
    %662 = vmatprep.subr.bf16.mxu0 %v551
    %663 = vmatpush1.bf16.msra.mxu0 %v550
    %664 = vmatprep.subr.bf16.mxu0 %v555
    %665 = vmatpush1.bf16.msra.mxu0 %v554
    %666 = vmatprep.subr.bf16.mxu0 %v559
    %667 = vmatpush1.bf16.msra.mxu0 %v558
    %668 = vmatprep.subr.bf16.mxu0 %v563
    %669 = vmatpush1.bf16.msra.mxu0 %v562
    %670 = vmatprep.subr.bf16.mxu0 %v567
    %671 = vmatpush1.bf16.msra.mxu0 %v566
    %672 = vmatprep.subr.bf16.mxu0 %v571
    %673 = vmatpush1.bf16.msra.mxu0 %v570
    %674 = vmatprep.subr.bf16.mxu0 %v575
    %675 = vmatpush1.bf16.msra.mxu0 %v574
    %676 = vmatprep.subr.bf16.mxu0 %v579
    %677 = vmatpush1.bf16.msra.mxu0 %v578
    %678 = vmatprep.mubr.bf16.mxu0 %v261
    %679 = vmatmul.mubr.bf16.gmra.mrb[0].mxu0 %v260
    %v680 = vpop.f32.mrb[0].mxu0
    %v681 = vadd.f32 0.0, %v680
    %v682 = vpop.f32.mrb[0].mxu0
    %v683 = vadd.f32 0.0, %v682
    %v684 = vpop.f32.mrb[0].mxu0
    %v685 = vpop.f32.mrb[0].mxu0
    %686 = vdwg.mxu0
    %687 = vmatprep.subr.bf16.mxu0 %v521
    %688 = vmatpush1.bf16.msra.mxu0 %v520
    %689 = vmatprep.subr.bf16.mxu0 %v525
    %690 = vmatpush1.bf16.msra.mxu0 %v524
    %691 = vmatprep.subr.bf16.mxu0 %v529
    %692 = vmatpush1.bf16.msra.mxu0 %v528
    %693 = vmatprep.subr.bf16.mxu0 %v533
    %694 = vmatpush1.bf16.msra.mxu0 %v532
    %695 = vmatprep.subr.bf16.mxu0 %v537
    %696 = vmatpush1.bf16.msra.mxu0 %v536
    %697 = vmatprep.subr.bf16.mxu0 %v541
    %698 = vmatpush1.bf16.msra.mxu0 %v540
    %699 = vmatprep.subr.bf16.mxu0 %v545
    %700 = vmatpush1.bf16.msra.mxu0 %v544
    %701 = vmatprep.subr.bf16.mxu0 %v549
    %702 = vmatpush1.bf16.msra.mxu0 %v548
    %703 = vmatprep.subr.bf16.mxu0 %v553
    %704 = vmatpush1.bf16.msra.mxu0 %v552
    %705 = vmatprep.subr.bf16.mxu0 %v557
    %706 = vmatpush1.bf16.msra.mxu0 %v556
    %707 = vmatprep.subr.bf16.mxu0 %v561
    %708 = vmatpush1.bf16.msra.mxu0 %v560
    %709 = vmatprep.subr.bf16.mxu0 %v565
    %710 = vmatpush1.bf16.msra.mxu0 %v564
    %711 = vmatprep.subr.bf16.mxu0 %v569
    %712 = vmatpush1.bf16.msra.mxu0 %v568
    %713 = vmatprep.subr.bf16.mxu0 %v573
    %714 = vmatpush1.bf16.msra.mxu0 %v572
    %715 = vmatprep.subr.bf16.mxu0 %v577
    %716 = vmatpush1.bf16.msra.mxu0 %v576
    %717 = vmatprep.subr.bf16.mxu0 %v581
    %718 = vmatpush1.bf16.msra.mxu0 %v580
    %719 = vmatprep.mubr.bf16.mxu0 %v261
    %720 = vmatmul.mubr.bf16.gmra.mrb[0].mxu0 %v260
    %v721 = vpop.f32.mrb[0].mxu0
    %v722 = vadd.f32 0.0, %v721
    %v723 = vpop.f32.mrb[0].mxu0
    %v724 = vadd.f32 0.0, %v723
    %v725 = vpop.f32.mrb[0].mxu0
    %v726 = vpop.f32.mrb[0].mxu0
    %727 = vdwg.mxu0
    %s728 = scalar_lea.vmem [#allocation7], 3
    %v729 = vld [vmem:[%s728] ss:$8 sm:$0x3]
    %v731 = vlaneseq
    %v732 = vshrl.u32 %v731, 7
    %v733 = vsub.s32 0, %v732
    %v734 = vrot.slane %v729, %v733
    %v735 = vlaneseq
    %v736 = vshrl.u32 %v735, 7
    %v737 = vsub.s32 1, %v736
    %v738 = vrot.slane %v729, %v737
    %v741 = vadd.f32 %v681, %v734
    %v742 = vadd.f32 %v683, %v738
    %v743 = vmax.f32 %v741, 0.0
    %v744 = vmax.f32 %v742, 0.0
    %s745 = scalar_lea.vmem [#allocation7], 4
    %v746 = vld [vmem:[%s745] ss:$8 sm:$0x3]
    %v748 = vlaneseq
    %v749 = vshrl.u32 %v748, 7
    %v750 = vsub.s32 0, %v749
    %v751 = vrot.slane %v746, %v750
    %v752 = vlaneseq
    %v753 = vshrl.u32 %v752, 7
    %v754 = vsub.s32 1, %v753
    %v755 = vrot.slane %v746, %v754
    %v758 = vmul.f32 %v743, %v751
    %v759 = vmul.f32 %v744, %v755
    %s760 = scalar_lea.vmem [#allocation7], 5
    %v761 = vld [vmem:[%s760] ss:$8 sm:$0x3]
    %v763 = vlaneseq
    %v764 = vshrl.u32 %v763, 7
    %v765 = vsub.s32 0, %v764
    %v766 = vrot.slane %v761, %v765
    %v767 = vlaneseq
    %v768 = vshrl.u32 %v767, 7
    %v769 = vsub.s32 1, %v768
    %v770 = vrot.slane %v761, %v769
    %v773 = vadd.f32 %v758, %v766
    %v774 = vadd.f32 %v759, %v770
    %v775 = vadd.f32 %v773, %v722
    %v776 = vadd.f32 %v774, %v724
    %778 = vrot.lane.b32.xlu0 %v775, 96
    %v779 = vpop.permute.xlu0 %778
    %781 = vrot.lane.b32.xlu0 %v775, 64
    %v782 = vpop.permute.xlu0 %781
    %784 = vrot.lane.b32.xlu0 %v775, 32
    %v785 = vpop.permute.xlu0 %784
    %788 = vrot.lane.b32.xlu0 %v776, 96
    %v789 = vpop.permute.xlu0 %788
    %791 = vrot.lane.b32.xlu0 %v776, 64
    %v792 = vpop.permute.xlu0 %791
    %794 = vrot.lane.b32.xlu0 %v776, 32
    %v795 = vpop.permute.xlu0 %794
    %v797 = vld [vmem:[%s5] sm:$0xff]
    %v798 = vld [vmem:[%s5 + $0x8] sm:$0xff]
    %v799 = vld [vmem:[%s5 + $0x10] sm:$0xff]
    %v800 = vld [vmem:[%s5 + $0x18] sm:$0xff]
    %v801 = vld [vmem:[%s5 + $0x20] sm:$0xff]
    %v802 = vld [vmem:[%s5 + $0x28] sm:$0xff]
    %v803 = vld [vmem:[%s5 + $0x30] sm:$0xff]
    %v804 = vld [vmem:[%s5 + $0x38] sm:$0xff]
    %v805 = vld [vmem:[#allocation7 + $0x7] ss:$0 sm:$0xff]
    %v806 = vld [vmem:[#allocation7 + $0x10] ss:$0 sm:$0xff]
    %v807 = vsel %vm72, %v775, 0.0
    %808 = vadd.xlane.f32.xlu0 %v807
    %v809 = vpop.xlane.xlu0 %808
    %v810 = vsel %vm72, %v779, 0.0
    %811 = vadd.xlane.f32.xlu0 %v810
    %v812 = vpop.xlane.xlu0 %811
    %v813 = vsel %vm72, %v782, 0.0
    %814 = vadd.xlane.f32.xlu0 %v813
    %v815 = vpop.xlane.xlu0 %814
    %v816 = vsel %vm72, %v785, 0.0
    %817 = vadd.xlane.f32.xlu0 %v816
    %v818 = vpop.xlane.xlu0 %817
    %v819 = vsel %vm72, %v776, 0.0
    %820 = vadd.xlane.f32.xlu0 %v819
    %v821 = vpop.xlane.xlu0 %820
    %v822 = vsel %vm72, %v789, 0.0
    %823 = vadd.xlane.f32.xlu0 %v822
    %v824 = vpop.xlane.xlu0 %823
    %v825 = vsel %vm72, %v792, 0.0
    %826 = vadd.xlane.f32.xlu0 %v825
    %v827 = vpop.xlane.xlu0 %826
    %v828 = vsel %vm72, %v795, 0.0
    %829 = vadd.xlane.f32.xlu0 %v828
    %v830 = vpop.xlane.xlu0 %829
    %v831 = vrcp.pop 32.0
    %v832 = vmul.f32 %v809, %v831
    %v833 = vmul.f32 %v812, %v831
    %v834 = vmul.f32 %v815, %v831
    %v835 = vmul.f32 %v818, %v831
    %v836 = vmul.f32 %v821, %v831
    %v837 = vmul.f32 %v824, %v831
    %v838 = vmul.f32 %v827, %v831
    %v839 = vmul.f32 %v830, %v831
    %v840 = vmul.f32 %v775, %v775
    %v841 = vmul.f32 %v779, %v779
    %v842 = vmul.f32 %v782, %v782
    %v843 = vmul.f32 %v785, %v785
    %v844 = vmul.f32 %v776, %v776
    %v845 = vmul.f32 %v789, %v789
    %v846 = vmul.f32 %v792, %v792
    %v847 = vmul.f32 %v795, %v795
    %v848 = vsel %vm72, %v840, 0.0
    %849 = vadd.xlane.f32.xlu0 %v848
    %v850 = vpop.xlane.xlu0 %849
    %v851 = vsel %vm72, %v841, 0.0
    %852 = vadd.xlane.f32.xlu0 %v851
    %v853 = vpop.xlane.xlu0 %852
    %v854 = vsel %vm72, %v842, 0.0
    %855 = vadd.xlane.f32.xlu0 %v854
    %v856 = vpop.xlane.xlu0 %855
    %v857 = vsel %vm72, %v843, 0.0
    %858 = vadd.xlane.f32.xlu0 %v857
    %v859 = vpop.xlane.xlu0 %858
    %v860 = vsel %vm72, %v844, 0.0
    %861 = vadd.xlane.f32.xlu0 %v860
    %v862 = vpop.xlane.xlu0 %861
    %v863 = vsel %vm72, %v845, 0.0
    %864 = vadd.xlane.f32.xlu0 %v863
    %v865 = vpop.xlane.xlu0 %864
    %v866 = vsel %vm72, %v846, 0.0
    %867 = vadd.xlane.f32.xlu0 %v866
    %v868 = vpop.xlane.xlu0 %867
    %v869 = vsel %vm72, %v847, 0.0
    %870 = vadd.xlane.f32.xlu0 %v869
    %v871 = vpop.xlane.xlu0 %870
    %v872 = vmul.f32 %v850, %v831
    %v873 = vmul.f32 %v853, %v831
    %v874 = vmul.f32 %v856, %v831
    %v875 = vmul.f32 %v859, %v831
    %v876 = vmul.f32 %v862, %v831
    %v877 = vmul.f32 %v865, %v831
    %v878 = vmul.f32 %v868, %v831
    %v879 = vmul.f32 %v871, %v831
    %v880 = vsub.f32 %v775, %v832
    %v881 = vsub.f32 %v779, %v833
    %v882 = vsub.f32 %v782, %v834
    %v883 = vsub.f32 %v785, %v835
    %v884 = vsub.f32 %v776, %v836
    %v885 = vsub.f32 %v789, %v837
    %v886 = vsub.f32 %v792, %v838
    %v887 = vsub.f32 %v795, %v839
    %v888 = vmul.f32 %v832, %v832
    %v889 = vmul.f32 %v833, %v833
    %v890 = vmul.f32 %v834, %v834
    %v891 = vmul.f32 %v835, %v835
    %v892 = vmul.f32 %v836, %v836
    %v893 = vmul.f32 %v837, %v837
    %v894 = vmul.f32 %v838, %v838
    %v895 = vmul.f32 %v839, %v839
    %v896 = vsub.f32 %v872, %v888
    %v897 = vsub.f32 %v873, %v889
    %v898 = vsub.f32 %v874, %v890
    %v899 = vsub.f32 %v875, %v891
    %v900 = vsub.f32 %v876, %v892
    %v901 = vsub.f32 %v877, %v893
    %v902 = vsub.f32 %v878, %v894
    %v903 = vsub.f32 %v879, %v895
    %v904 = vadd.f32 %v896, 1e-05
    %v905 = vadd.f32 %v897, 1e-05
    %v906 = vadd.f32 %v898, 1e-05
    %v907 = vadd.f32 %v899, 1e-05
    %v908 = vadd.f32 %v900, 1e-05
    %v909 = vadd.f32 %v901, 1e-05
    %v910 = vadd.f32 %v902, 1e-05
    %v911 = vadd.f32 %v903, 1e-05
    %v912 = vrsqrt.pop %v904
    %v913 = vrsqrt.pop %v905
    %v914 = vrsqrt.pop %v906
    %v915 = vrsqrt.pop %v907
    %v916 = vrsqrt.pop %v908
    %v917 = vrsqrt.pop %v909
    %v918 = vrsqrt.pop %v910
    %v919 = vrsqrt.pop %v911
    %v920 = vmul.f32 %v880, %v912
    %v921 = vmul.f32 %v881, %v913
    %v922 = vmul.f32 %v882, %v914
    %v923 = vmul.f32 %v883, %v915
    %v924 = vmul.f32 %v884, %v916
    %v925 = vmul.f32 %v885, %v917
    %v926 = vmul.f32 %v886, %v918
    %v927 = vmul.f32 %v887, %v919
    %v928 = vmul.f32 %v920, %v805
    %v929 = vmul.f32 %v921, %v805
    %v930 = vmul.f32 %v922, %v805
    %v931 = vmul.f32 %v923, %v805
    %v932 = vmul.f32 %v924, %v805
    %v933 = vmul.f32 %v925, %v805
    %v934 = vmul.f32 %v926, %v805
    %v935 = vmul.f32 %v927, %v805
    %v936 = vadd.f32 %v928, %v806
    %v937 = vadd.f32 %v929, %v806
    %v938 = vadd.f32 %v930, %v806
    %v939 = vadd.f32 %v931, %v806
    %v940 = vadd.f32 %v932, %v806
    %v941 = vadd.f32 %v933, %v806
    %v942 = vadd.f32 %v934, %v806
    %v943 = vadd.f32 %v935, %v806
    %v944 = vld [vmem:[%s3] sm:$0xff]
    %v945 = vld [vmem:[%s3 + $0x20] sm:$0xff]
    %v946 = vld [vmem:[%s3 + $0x40] sm:$0xff]
    %v947 = vld [vmem:[%s3 + $0x60] sm:$0xff]
    %v948 = vld [vmem:[#allocation7 + $0x13] ss:$0 sm:$0xff]
    %v950 = vsel %vm72, %v936, 0
    %v953 = vsel %vm72, %v937, 0
    %v956 = vsel %vm72, %v938, 0
    %v959 = vsel %vm72, %v939, 0
    %v962 = vsel %vm72, %v940, 0
    %v965 = vsel %vm72, %v941, 0
    %v968 = vsel %vm72, %v942, 0
    %v971 = vsel %vm72, %v943, 0
    %973 = vmatprep.subr.mxu0 0.0
    %974 = vmatpush1.msra.mxu0 %v944
    %975 = vmatprep.subr.mxu0 0.0
    %976 = vmatpush1.msra.mxu0 %v945
    %977 = vmatprep.subr.mxu0 0.0
    %978 = vmatpush1.msra.mxu0 %v946
    %979 = vmatprep.subr.mxu0 0.0
    %980 = vmatpush1.msra.mxu0 %v947
    %981 = vmatprep.subr.mxu0 0.0
    %982 = vmatpush1.msra.mxu0 0.0
    %983 = vmatprep.subr.mxu0 0.0
    %984 = vmatpush1.msra.mxu0 0.0
    %985 = vmatprep.subr.mxu0 0.0
    %986 = vmatpush1.msra.mxu0 0.0
    %987 = vmatprep.subr.mxu0 0.0
    %988 = vmatpush1.msra.mxu0 0.0
    %989 = vmatprep.subr.mxu0 0.0
    %990 = vmatpush1.msra.mxu0 0.0
    %991 = vmatprep.subr.mxu0 0.0
    %992 = vmatpush1.msra.mxu0 0.0
    %993 = vmatprep.subr.mxu0 0.0
    %994 = vmatpush1.msra.mxu0 0.0
    %995 = vmatprep.subr.mxu0 0.0
    %996 = vmatpush1.msra.mxu0 0.0
    %997 = vmatprep.subr.mxu0 0.0
    %998 = vmatpush1.msra.mxu0 0.0
    %999 = vmatprep.subr.mxu0 0.0
    %1000 = vmatpush1.msra.mxu0 0.0
    %1001 = vmatprep.subr.mxu0 0.0
    %1002 = vmatpush1.msra.mxu0 0.0
    %1003 = vmatprep.subr.mxu0 0.0
    %1004 = vmatpush1.msra.mxu0 0.0
    %1005 = vmatprep.subr.mxu0 0.0
    %1006 = vmatpush1.msra.mxu0 0.0
    %1007 = vmatprep.subr.mxu0 0.0
    %1008 = vmatpush1.msra.mxu0 0.0
    %1009 = vmatprep.subr.mxu0 0.0
    %1010 = vmatpush1.msra.mxu0 0.0
    %1011 = vmatprep.subr.mxu0 0.0
    %1012 = vmatpush1.msra.mxu0 0.0
    %1013 = vmatprep.subr.mxu0 0.0
    %1014 = vmatpush1.msra.mxu0 0.0
    %1015 = vmatprep.subr.mxu0 0.0
    %1016 = vmatpush1.msra.mxu0 0.0
    %1017 = vmatprep.subr.mxu0 0.0
    %1018 = vmatpush1.msra.mxu0 0.0
    %1019 = vmatprep.subr.mxu0 0.0
    %1020 = vmatpush1.msra.mxu0 0.0
    %1021 = vmatprep.subr.mxu0 0.0
    %1022 = vmatpush1.msra.mxu0 0.0
    %1023 = vmatprep.subr.mxu0 0.0
    %1024 = vmatpush1.msra.mxu0 0.0
    %1025 = vmatprep.subr.mxu0 0.0
    %1026 = vmatpush1.msra.mxu0 0.0
    %1027 = vmatprep.subr.mxu0 0.0
    %1028 = vmatpush1.msra.mxu0 0.0
    %1029 = vmatprep.subr.mxu0 0.0
    %1030 = vmatpush1.msra.mxu0 0.0
    %1031 = vmatprep.subr.mxu0 0.0
    %1032 = vmatpush1.msra.mxu0 0.0
    %1033 = vmatprep.subr.mxu0 0.0
    %1034 = vmatpush1.msra.mxu0 0.0
    %1035 = vmatprep.subr.mxu0 0.0
    %1036 = vmatpush1.msra.mxu0 0.0
    %1037 = vmatprep.mubr.f32.mxu0 0.0
    %1038 = vmatmul.mubr.f32.gmra.mrb[0].mxu0 %v950
    %v1039 = vpop.f32.mrb[0].mxu0
    %v1040 = vadd.f32 %v948, %v1039
    %v1041 = vpop.f32.mrb[0].mxu0
    %1042 = vmatprep.mubr.f32.mxu0 0.0
    %1043 = vmatmul.mubr.f32.gmra.mrb[0].mxu0 %v953
    %v1044 = vpop.f32.mrb[0].mxu0
    %v1045 = vadd.f32 %v948, %v1044
    %v1046 = vpop.f32.mrb[0].mxu0
    %1047 = vmatprep.mubr.f32.mxu0 0.0
    %1048 = vmatmul.mubr.f32.gmra.mrb[0].mxu0 %v956
    %v1049 = vpop.f32.mrb[0].mxu0
    %v1050 = vadd.f32 %v948, %v1049
    %v1051 = vpop.f32.mrb[0].mxu0
    %1052 = vmatprep.mubr.f32.mxu0 0.0
    %1053 = vmatmul.mubr.f32.gmra.mrb[0].mxu0 %v959
    %v1054 = vpop.f32.mrb[0].mxu0
    %v1055 = vadd.f32 %v948, %v1054
    %v1056 = vpop.f32.mrb[0].mxu0
    %1057 = vmatprep.mubr.f32.mxu0 0.0
    %1058 = vmatmul.mubr.f32.gmra.mrb[0].mxu0 %v962
    %v1059 = vpop.f32.mrb[0].mxu0
    %v1060 = vadd.f32 %v948, %v1059
    %v1061 = vpop.f32.mrb[0].mxu0
    %1062 = vmatprep.mubr.f32.mxu0 0.0
    %1063 = vmatmul.mubr.f32.gmra.mrb[0].mxu0 %v965
    %v1064 = vpop.f32.mrb[0].mxu0
    %v1065 = vadd.f32 %v948, %v1064
    %v1066 = vpop.f32.mrb[0].mxu0
    %1067 = vmatprep.mubr.f32.mxu0 0.0
    %1068 = vmatmul.mubr.f32.gmra.mrb[0].mxu0 %v968
    %v1069 = vpop.f32.mrb[0].mxu0
    %v1070 = vadd.f32 %v948, %v1069
    %v1071 = vpop.f32.mrb[0].mxu0
    %1072 = vmatprep.mubr.f32.mxu0 0.0
    %1073 = vmatmul.mubr.f32.gmra.mrb[0].mxu0 %v971
    %v1074 = vpop.f32.mrb[0].mxu0
    %v1075 = vadd.f32 %v948, %v1074
    %v1076 = vpop.f32.mrb[0].mxu0
    %1077 = vdwg.mxu0
    %v1078 = vld [vmem:[%s3 + $0x8] sm:$0xff]
    %v1079 = vld [vmem:[%s3 + $0x28] sm:$0xff]
    %v1080 = vld [vmem:[%s3 + $0x48] sm:$0xff]
    %v1081 = vld [vmem:[%s3 + $0x68] sm:$0xff]
    %v1082 = vld [vmem:[#allocation7 + $0x14] ss:$0 sm:$0xff]
    %1091 = vrot.lane.b32.xlu0 %v1040, 96
    %v1092 = vpop.permute.xlu0 %1091
    %1093 = vrot.lane.b32.xlu0 %v1045, 96
    %v1094 = vpop.permute.xlu0 %1093
    %1095 = vrot.lane.b32.xlu0 %v1050, 96
    %v1096 = vpop.permute.xlu0 %1095
    %1097 = vrot.lane.b32.xlu0 %v1055, 96
    %v1098 = vpop.permute.xlu0 %1097
    %1099 = vrot.lane.b32.xlu0 %v1060, 96
    %v1100 = vpop.permute.xlu0 %1099
    %1101 = vrot.lane.b32.xlu0 %v1065, 96
    %v1102 = vpop.permute.xlu0 %1101
    %1103 = vrot.lane.b32.xlu0 %v1070, 96
    %v1104 = vpop.permute.xlu0 %1103
    %1105 = vrot.lane.b32.xlu0 %v1075, 96
    %v1106 = vpop.permute.xlu0 %1105
    %vm1107 = vcmask 130048
    %v1108 = vsel %vm1107, %v1040, 0
    %v1110 = vsel %vm1107, %v1045, 0
    %v1112 = vsel %vm1107, %v1050, 0
    %v1114 = vsel %vm1107, %v1055, 0
    %v1116 = vsel %vm1107, %v1060, 0
    %v1118 = vsel %vm1107, %v1065, 0
    %v1120 = vsel %vm1107, %v1070, 0
    %v1122 = vsel %vm1107, %v1075, 0
    %v1124 = vsel %vm1107, %v1092, 0
    %v1126 = vsel %vm1107, %v1094, 0
    %v1128 = vsel %vm1107, %v1096, 0
    %v1130 = vsel %vm1107, %v1098, 0
    %v1132 = vsel %vm1107, %v1100, 0
    %v1134 = vsel %vm1107, %v1102, 0
    %v1136 = vsel %vm1107, %v1104, 0
    %v1138 = vsel %vm1107, %v1106, 0
    %1140 = vmatprep.subr.mxu0 0.0
    %1141 = vmatpush1.xpose.msra.mxu0 %v1124
    %1142 = vmatprep.subr.mxu0 0.0
    %1143 = vmatpush1.xpose.msra.mxu0 %v1126
    %1144 = vmatprep.subr.mxu0 0.0
    %1145 = vmatpush1.xpose.msra.mxu0 %v1128
    %1146 = vmatprep.subr.mxu0 0.0
    %1147 = vmatpush1.xpose.msra.mxu0 %v1130
    %1148 = vmatprep.subr.mxu0 0.0
    %1149 = vmatpush1.xpose.msra.mxu0 %v1132
    %1150 = vmatprep.subr.mxu0 0.0
    %1151 = vmatpush1.xpose.msra.mxu0 %v1134
    %1152 = vmatprep.subr.mxu0 0.0
    %1153 = vmatpush1.xpose.msra.mxu0 %v1136
    %1154 = vmatprep.subr.mxu0 0.0
    %1155 = vmatpush1.xpose.msra.mxu0 %v1138
    %1156 = vmatprep.subr.mxu0 0.0
    %1157 = vmatpush1.xpose.msra.mxu0 0.0
    %1158 = vmatprep.subr.mxu0 0.0
    %1159 = vmatpush1.xpose.msra.mxu0 0.0
    %1160 = vmatprep.subr.mxu0 0.0
    %1161 = vmatpush1.xpose.msra.mxu0 0.0
    %1162 = vmatprep.subr.mxu0 0.0
    %1163 = vmatpush1.xpose.msra.mxu0 0.0
    %1164 = vmatprep.subr.mxu0 0.0
    %1165 = vmatpush1.xpose.msra.mxu0 0.0
    %1166 = vmatprep.subr.mxu0 0.0
    %1167 = vmatpush1.xpose.msra.mxu0 0.0
    %1168 = vmatprep.subr.mxu0 0.0
    %1169 = vmatpush1.xpose.msra.mxu0 0.0
    %1170 = vmatprep.subr.mxu0 0.0
    %1171 = vmatpush1.xpose.msra.mxu0 0.0
    %1172 = vmatprep.subr.mxu0 0.0
    %1173 = vmatpush1.xpose.msra.mxu0 0.0
    %1174 = vmatprep.subr.mxu0 0.0
    %1175 = vmatpush1.xpose.msra.mxu0 0.0
    %1176 = vmatprep.subr.mxu0 0.0
    %1177 = vmatpush1.xpose.msra.mxu0 0.0
    %1178 = vmatprep.subr.mxu0 0.0
    %1179 = vmatpush1.xpose.msra.mxu0 0.0
    %1180 = vmatprep.subr.mxu0 0.0
    %1181 = vmatpush1.xpose.msra.mxu0 0.0
    %1182 = vmatprep.subr.mxu0 0.0
    %1183 = vmatpush1.xpose.msra.mxu0 0.0
    %1184 = vmatprep.subr.mxu0 0.0
    %1185 = vmatpush1.xpose.msra.mxu0 0.0
    %1186 = vmatprep.subr.mxu0 0.0
    %1187 = vmatpush1.xpose.msra.mxu0 0.0
    %1188 = vmatprep.subr.mxu0 0.0
    %1189 = vmatpush1.xpose.msra.mxu0 0.0
    %1190 = vmatprep.subr.mxu0 0.0
    %1191 = vmatpush1.xpose.msra.mxu0 0.0
    %1192 = vmatprep.subr.mxu0 0.0
    %1193 = vmatpush1.xpose.msra.mxu0 0.0
    %1194 = vmatprep.subr.mxu0 0.0
    %1195 = vmatpush1.xpose.msra.mxu0 0.0
    %1196 = vmatprep.subr.mxu0 0.0
    %1197 = vmatpush1.xpose.msra.mxu0 0.0
    %1198 = vmatprep.subr.mxu0 0.0
    %1199 = vmatpush1.xpose.msra.mxu0 0.0
    %1200 = vmatprep.subr.mxu0 0.0
    %1201 = vmatpush1.xpose.msra.mxu0 0.0
    %1202 = vmatprep.subr.mxu0 0.0
    %1203 = vmatpush1.xpose.msra.mxu0 0.0
    %1204 = vmatprep.mubr.f32.mxu0 0.0
    %1205 = vmatmul.mubr.f32.gmra.mrb[0].mxu0 %v1108
    %v1206 = vpop.f32.mrb[0].mxu0
    %v1207 = vadd.f32 0.0, %v1206
    %v1208 = vpop.f32.mrb[0].mxu0
    %1209 = vmatprep.mubr.f32.mxu0 0.0
    %1210 = vmatmul.mubr.f32.gmra.mrb[0].mxu0 %v1110
    %v1211 = vpop.f32.mrb[0].mxu0
    %v1212 = vadd.f32 0.0, %v1211
    %v1213 = vpop.f32.mrb[0].mxu0
    %1214 = vmatprep.mubr.f32.mxu0 0.0
    %1215 = vmatmul.mubr.f32.gmra.mrb[0].mxu0 %v1112
    %v1216 = vpop.f32.mrb[0].mxu0
    %v1217 = vadd.f32 0.0, %v1216
    %v1218 = vpop.f32.mrb[0].mxu0
    %1219 = vmatprep.mubr.f32.mxu0 0.0
    %1220 = vmatmul.mubr.f32.gmra.mrb[0].mxu0 %v1114
    %v1221 = vpop.f32.mrb[0].mxu0
    %v1222 = vadd.f32 0.0, %v1221
    %v1223 = vpop.f32.mrb[0].mxu0
    %1224 = vmatprep.mubr.f32.mxu0 0.0
    %1225 = vmatmul.mubr.f32.gmra.mrb[0].mxu0 %v1116
    %v1226 = vpop.f32.mrb[0].mxu0
    %v1227 = vadd.f32 0.0, %v1226
    %v1228 = vpop.f32.mrb[0].mxu0
    %1229 = vmatprep.mubr.f32.mxu0 0.0
    %1230 = vmatmul.mubr.f32.gmra.mrb[0].mxu0 %v1118
    %v1231 = vpop.f32.mrb[0].mxu0
    %v1232 = vadd.f32 0.0, %v1231
    %v1233 = vpop.f32.mrb[0].mxu0
    %1234 = vmatprep.mubr.f32.mxu0 0.0
    %1235 = vmatmul.mubr.f32.gmra.mrb[0].mxu0 %v1120
    %v1236 = vpop.f32.mrb[0].mxu0
    %v1237 = vadd.f32 0.0, %v1236
    %v1238 = vpop.f32.mrb[0].mxu0
    %1239 = vmatprep.mubr.f32.mxu0 0.0
    %1240 = vmatmul.mubr.f32.gmra.mrb[0].mxu0 %v1122
    %v1241 = vpop.f32.mrb[0].mxu0
    %v1242 = vadd.f32 0.0, %v1241
    %v1243 = vpop.f32.mrb[0].mxu0
    %1244 = vdwg.mxu0
    %v1245 = vmul.f32 %v1207, 0.25
    %v1246 = vmul.f32 %v1212, 0.25
    %v1247 = vmul.f32 %v1217, 0.25
    %v1248 = vmul.f32 %v1222, 0.25
    %v1249 = vmul.f32 %v1227, 0.25
    %v1250 = vmul.f32 %v1232, 0.25
    %v1251 = vmul.f32 %v1237, 0.25
    %v1252 = vmul.f32 %v1242, 0.25
    %v1253 = vadd.f32 %v1245, %v797
    %v1254 = vadd.f32 %v1246, %v798
    %v1255 = vadd.f32 %v1247, %v799
    %v1256 = vadd.f32 %v1248, %v800
    %v1257 = vadd.f32 %v1249, %v801
    %v1258 = vadd.f32 %v1250, %v802
    %v1259 = vadd.f32 %v1251, %v803
    %v1260 = vadd.f32 %v1252, %v804
    %vm1261 = vcmask 523264
    %v1262 = vsel %vm1261, %v1253, -inf
    %1263 = vmax.xlane.f32.xlu0 %v1262
    %v1264 = vpop.xlane.xlu0 %1263
    %v1265 = vsel %vm1261, %v1254, -inf
    %1266 = vmax.xlane.f32.xlu0 %v1265
    %v1267 = vpop.xlane.xlu0 %1266
    %v1268 = vsel %vm1261, %v1255, -inf
    %1269 = vmax.xlane.f32.xlu0 %v1268
    %v1270 = vpop.xlane.xlu0 %1269
    %v1271 = vsel %vm1261, %v1256, -inf
    %1272 = vmax.xlane.f32.xlu0 %v1271
    %v1273 = vpop.xlane.xlu0 %1272
    %v1274 = vsel %vm1261, %v1257, -inf
    %1275 = vmax.xlane.f32.xlu0 %v1274
    %v1276 = vpop.xlane.xlu0 %1275
    %v1277 = vsel %vm1261, %v1258, -inf
    %1278 = vmax.xlane.f32.xlu0 %v1277
    %v1279 = vpop.xlane.xlu0 %1278
    %v1280 = vsel %vm1261, %v1259, -inf
    %1281 = vmax.xlane.f32.xlu0 %v1280
    %v1282 = vpop.xlane.xlu0 %1281
    %v1283 = vsel %vm1261, %v1260, -inf
    %1284 = vmax.xlane.f32.xlu0 %v1283
    %v1285 = vpop.xlane.xlu0 %1284
    %v1286 = vsub.f32 %v1253, %v1264
    %v1287 = vsub.f32 %v1254, %v1267
    %v1288 = vsub.f32 %v1255, %v1270
    %v1289 = vsub.f32 %v1256, %v1273
    %v1290 = vsub.f32 %v1257, %v1276
    %v1291 = vsub.f32 %v1258, %v1279
    %v1292 = vsub.f32 %v1259, %v1282
    %v1293 = vsub.f32 %v1260, %v1285
    %v1294 = vmul.f32 %v1286, 1.442695
    %v1295 = vpow.pop %v1294
    %v1296 = vmul.f32 %v1287, 1.442695
    %v1297 = vpow.pop %v1296
    %v1298 = vmul.f32 %v1288, 1.442695
    %v1299 = vpow.pop %v1298
    %v1300 = vmul.f32 %v1289, 1.442695
    %v1301 = vpow.pop %v1300
    %v1302 = vmul.f32 %v1290, 1.442695
    %v1303 = vpow.pop %v1302
    %v1304 = vmul.f32 %v1291, 1.442695
    %v1305 = vpow.pop %v1304
    %v1306 = vmul.f32 %v1292, 1.442695
    %v1307 = vpow.pop %v1306
    %v1308 = vmul.f32 %v1293, 1.442695
    %v1309 = vpow.pop %v1308
    %v1310 = vsel %vm1261, %v1295, 0.0
    %1311 = vadd.xlane.f32.xlu0 %v1310
    %v1312 = vpop.xlane.xlu0 %1311
    %v1313 = vsel %vm1261, %v1297, 0.0
    %1314 = vadd.xlane.f32.xlu0 %v1313
    %v1315 = vpop.xlane.xlu0 %1314
    %v1316 = vsel %vm1261, %v1299, 0.0
    %1317 = vadd.xlane.f32.xlu0 %v1316
    %v1318 = vpop.xlane.xlu0 %1317
    %v1319 = vsel %vm1261, %v1301, 0.0
    %1320 = vadd.xlane.f32.xlu0 %v1319
    %v1321 = vpop.xlane.xlu0 %1320
    %v1322 = vsel %vm1261, %v1303, 0.0
    %1323 = vadd.xlane.f32.xlu0 %v1322
    %v1324 = vpop.xlane.xlu0 %1323
    %v1325 = vsel %vm1261, %v1305, 0.0
    %1326 = vadd.xlane.f32.xlu0 %v1325
    %v1327 = vpop.xlane.xlu0 %1326
    %v1328 = vsel %vm1261, %v1307, 0.0
    %1329 = vadd.xlane.f32.xlu0 %v1328
    %v1330 = vpop.xlane.xlu0 %1329
    %v1331 = vsel %vm1261, %v1309, 0.0
    %1332 = vadd.xlane.f32.xlu0 %v1331
    %v1333 = vpop.xlane.xlu0 %1332
    %v1334 = vrcp.pop %v1312
    %v1335 = vrcp.pop %v1315
    %v1336 = vrcp.pop %v1318
    %v1337 = vrcp.pop %v1321
    %v1338 = vrcp.pop %v1324
    %v1339 = vrcp.pop %v1327
    %v1340 = vrcp.pop %v1330
    %v1341 = vrcp.pop %v1333
    %v1342 = vmul.f32 %v1295, %v1334
    %v1343 = vmul.f32 %v1297, %v1335
    %v1344 = vmul.f32 %v1299, %v1336
    %v1345 = vmul.f32 %v1301, %v1337
    %v1346 = vmul.f32 %v1303, %v1338
    %v1347 = vmul.f32 %v1305, %v1339
    %v1348 = vmul.f32 %v1307, %v1340
    %v1349 = vmul.f32 %v1309, %v1341
    %1350 = vrot.lane.b32.xlu0 %v1040, 64
    %v1351 = vpop.permute.xlu0 %1350
    %1352 = vrot.lane.b32.xlu0 %v1045, 64
    %v1353 = vpop.permute.xlu0 %1352
    %1354 = vrot.lane.b32.xlu0 %v1050, 64
    %v1355 = vpop.permute.xlu0 %1354
    %1356 = vrot.lane.b32.xlu0 %v1055, 64
    %v1357 = vpop.permute.xlu0 %1356
    %1358 = vrot.lane.b32.xlu0 %v1060, 64
    %v1359 = vpop.permute.xlu0 %1358
    %1360 = vrot.lane.b32.xlu0 %v1065, 64
    %v1361 = vpop.permute.xlu0 %1360
    %1362 = vrot.lane.b32.xlu0 %v1070, 64
    %v1363 = vpop.permute.xlu0 %1362
    %1364 = vrot.lane.b32.xlu0 %v1075, 64
    %v1365 = vpop.permute.xlu0 %1364
    %v1375 = vsel %vm1261, %v1342, 0
    %v1378 = vsel %vm1261, %v1343, 0
    %v1381 = vsel %vm1261, %v1344, 0
    %v1384 = vsel %vm1261, %v1345, 0
    %v1387 = vsel %vm1261, %v1346, 0
    %v1390 = vsel %vm1261, %v1347, 0
    %v1393 = vsel %vm1261, %v1348, 0
    %v1396 = vsel %vm1261, %v1349, 0
    %1398 = vmatprep.subr.mxu0 0.0
    %1399 = vmatpush1.msra.mxu0 %v1351
    %1400 = vmatprep.subr.mxu0 0.0
    %1401 = vmatpush1.msra.mxu0 %v1353
    %1402 = vmatprep.subr.mxu0 0.0
    %1403 = vmatpush1.msra.mxu0 %v1355
    %1404 = vmatprep.subr.mxu0 0.0
    %1405 = vmatpush1.msra.mxu0 %v1357
    %1406 = vmatprep.subr.mxu0 0.0
    %1407 = vmatpush1.msra.mxu0 %v1359
    %1408 = vmatprep.subr.mxu0 0.0
    %1409 = vmatpush1.msra.mxu0 %v1361
    %1410 = vmatprep.subr.mxu0 0.0
    %1411 = vmatpush1.msra.mxu0 %v1363
    %1412 = vmatprep.subr.mxu0 0.0
    %1413 = vmatpush1.msra.mxu0 %v1365
    %1414 = vmatprep.subr.mxu0 0.0
    %1415 = vmatpush1.msra.mxu0 0.0
    %1416 = vmatprep.subr.mxu0 0.0
    %1417 = vmatpush1.msra.mxu0 0.0
    %1418 = vmatprep.subr.mxu0 0.0
    %1419 = vmatpush1.msra.mxu0 0.0
    %1420 = vmatprep.subr.mxu0 0.0
    %1421 = vmatpush1.msra.mxu0 0.0
    %1422 = vmatprep.subr.mxu0 0.0
    %1423 = vmatpush1.msra.mxu0 0.0
    %1424 = vmatprep.subr.mxu0 0.0
    %1425 = vmatpush1.msra.mxu0 0.0
    %1426 = vmatprep.subr.mxu0 0.0
    %1427 = vmatpush1.msra.mxu0 0.0
    %1428 = vmatprep.subr.mxu0 0.0
    %1429 = vmatpush1.msra.mxu0 0.0
    %1430 = vmatprep.subr.mxu0 0.0
    %1431 = vmatpush1.msra.mxu0 0.0
    %1432 = vmatprep.subr.mxu0 0.0
    %1433 = vmatpush1.msra.mxu0 0.0
    %1434 = vmatprep.subr.mxu0 0.0
    %1435 = vmatpush1.msra.mxu0 0.0
    %1436 = vmatprep.subr.mxu0 0.0
    %1437 = vmatpush1.msra.mxu0 0.0
    %1438 = vmatprep.subr.mxu0 0.0
    %1439 = vmatpush1.msra.mxu0 0.0
    %1440 = vmatprep.subr.mxu0 0.0
    %1441 = vmatpush1.msra.mxu0 0.0
    %1442 = vmatprep.subr.mxu0 0.0
    %1443 = vmatpush1.msra.mxu0 0.0
    %1444 = vmatprep.subr.mxu0 0.0
    %1445 = vmatpush1.msra.mxu0 0.0
    %1446 = vmatprep.subr.mxu0 0.0
    %1447 = vmatpush1.msra.mxu0 0.0
    %1448 = vmatprep.subr.mxu0 0.0
    %1449 = vmatpush1.msra.mxu0 0.0
    %1450 = vmatprep.subr.mxu0 0.0
    %1451 = vmatpush1.msra.mxu0 0.0
    %1452 = vmatprep.subr.mxu0 0.0
    %1453 = vmatpush1.msra.mxu0 0.0
    %1454 = vmatprep.subr.mxu0 0.0
    %1455 = vmatpush1.msra.mxu0 0.0
    %1456 = vmatprep.subr.mxu0 0.0
    %1457 = vmatpush1.msra.mxu0 0.0
    %1458 = vmatprep.subr.mxu0 0.0
    %1459 = vmatpush1.msra.mxu0 0.0
    %1460 = vmatprep.subr.mxu0 0.0
    %1461 = vmatpush1.msra.mxu0 0.0
    %1462 = vmatprep.mubr.f32.mxu0 0.0
    %1463 = vmatmul.mubr.f32.gmra.mrb[0].mxu0 %v1375
    %v1464 = vpop.f32.mrb[0].mxu0
    %v1465 = vadd.f32 0.0, %v1464
    %v1466 = vpop.f32.mrb[0].mxu0
    %1467 = vmatprep.mubr.f32.mxu0 0.0
    %1468 = vmatmul.mubr.f32.gmra.mrb[0].mxu0 %v1378
    %v1469 = vpop.f32.mrb[0].mxu0
    %v1470 = vadd.f32 0.0, %v1469
    %v1471 = vpop.f32.mrb[0].mxu0
    %1472 = vmatprep.mubr.f32.mxu0 0.0
    %1473 = vmatmul.mubr.f32.gmra.mrb[0].mxu0 %v1381
    %v1474 = vpop.f32.mrb[0].mxu0
    %v1475 = vadd.f32 0.0, %v1474
    %v1476 = vpop.f32.mrb[0].mxu0
    %1477 = vmatprep.mubr.f32.mxu0 0.0
    %1478 = vmatmul.mubr.f32.gmra.mrb[0].mxu0 %v1384
    %v1479 = vpop.f32.mrb[0].mxu0
    %v1480 = vadd.f32 0.0, %v1479
    %v1481 = vpop.f32.mrb[0].mxu0
    %1482 = vmatprep.mubr.f32.mxu0 0.0
    %1483 = vmatmul.mubr.f32.gmra.mrb[0].mxu0 %v1387
    %v1484 = vpop.f32.mrb[0].mxu0
    %v1485 = vadd.f32 0.0, %v1484
    %v1486 = vpop.f32.mrb[0].mxu0
    %1487 = vmatprep.mubr.f32.mxu0 0.0
    %1488 = vmatmul.mubr.f32.gmra.mrb[0].mxu0 %v1390
    %v1489 = vpop.f32.mrb[0].mxu0
    %v1490 = vadd.f32 0.0, %v1489
    %v1491 = vpop.f32.mrb[0].mxu0
    %1492 = vmatprep.mubr.f32.mxu0 0.0
    %1493 = vmatmul.mubr.f32.gmra.mrb[0].mxu0 %v1393
    %v1494 = vpop.f32.mrb[0].mxu0
    %v1495 = vadd.f32 0.0, %v1494
    %v1496 = vpop.f32.mrb[0].mxu0
    %1497 = vmatprep.mubr.f32.mxu0 0.0
    %1498 = vmatmul.mubr.f32.gmra.mrb[0].mxu0 %v1396
    %v1499 = vpop.f32.mrb[0].mxu0
    %v1500 = vadd.f32 0.0, %v1499
    %v1501 = vpop.f32.mrb[0].mxu0
    %1502 = vdwg.mxu0
    %v1504 = vsel %vm1107, %v1465, 0
    %v1507 = vsel %vm1107, %v1470, 0
    %v1510 = vsel %vm1107, %v1475, 0
    %v1513 = vsel %vm1107, %v1480, 0
    %v1516 = vsel %vm1107, %v1485, 0
    %v1519 = vsel %vm1107, %v1490, 0
    %v1522 = vsel %vm1107, %v1495, 0
    %v1525 = vsel %vm1107, %v1500, 0
    %1527 = vmatprep.subr.mxu0 0.0
    %1528 = vmatpush1.msra.mxu0 %v1078
    %1529 = vmatprep.subr.mxu0 0.0
    %1530 = vmatpush1.msra.mxu0 %v1079
    %1531 = vmatprep.subr.mxu0 0.0
    %1532 = vmatpush1.msra.mxu0 0.0
    %1533 = vmatprep.subr.mxu0 0.0
    %1534 = vmatpush1.msra.mxu0 0.0
    %1535 = vmatprep.subr.mxu0 0.0
    %1536 = vmatpush1.msra.mxu0 0.0
    %1537 = vmatprep.subr.mxu0 0.0
    %1538 = vmatpush1.msra.mxu0 0.0
    %1539 = vmatprep.subr.mxu0 0.0
    %1540 = vmatpush1.msra.mxu0 0.0
    %1541 = vmatprep.subr.mxu0 0.0
    %1542 = vmatpush1.msra.mxu0 0.0
    %1543 = vmatprep.subr.mxu0 0.0
    %1544 = vmatpush1.msra.mxu0 0.0
    %1545 = vmatprep.subr.mxu0 0.0
    %1546 = vmatpush1.msra.mxu0 0.0
    %1547 = vmatprep.subr.mxu0 0.0
    %1548 = vmatpush1.msra.mxu0 0.0
    %1549 = vmatprep.subr.mxu0 0.0
    %1550 = vmatpush1.msra.mxu0 0.0
    %1551 = vmatprep.subr.mxu0 0.0
    %1552 = vmatpush1.msra.mxu0 0.0
    %1553 = vmatprep.subr.mxu0 0.0
    %1554 = vmatpush1.msra.mxu0 0.0
    %1555 = vmatprep.subr.mxu0 0.0
    %1556 = vmatpush1.msra.mxu0 0.0
    %1557 = vmatprep.subr.mxu0 0.0
    %1558 = vmatpush1.msra.mxu0 0.0
    %1559 = vmatprep.subr.mxu0 0.0
    %1560 = vmatpush1.msra.mxu0 0.0
    %1561 = vmatprep.subr.mxu0 0.0
    %1562 = vmatpush1.msra.mxu0 0.0
    %1563 = vmatprep.subr.mxu0 0.0
    %1564 = vmatpush1.msra.mxu0 0.0
    %1565 = vmatprep.subr.mxu0 0.0
    %1566 = vmatpush1.msra.mxu0 0.0
    %1567 = vmatprep.subr.mxu0 0.0
    %1568 = vmatpush1.msra.mxu0 0.0
    %1569 = vmatprep.subr.mxu0 0.0
    %1570 = vmatpush1.msra.mxu0 0.0
    %1571 = vmatprep.subr.mxu0 0.0
    %1572 = vmatpush1.msra.mxu0 0.0
    %1573 = vmatprep.subr.mxu0 0.0
    %1574 = vmatpush1.msra.mxu0 0.0
    %1575 = vmatprep.subr.mxu0 0.0
    %1576 = vmatpush1.msra.mxu0 0.0
    %1577 = vmatprep.subr.mxu0 0.0
    %1578 = vmatpush1.msra.mxu0 0.0
    %1579 = vmatprep.subr.mxu0 0.0
    %1580 = vmatpush1.msra.mxu0 0.0
    %1581 = vmatprep.subr.mxu0 0.0
    %1582 = vmatpush1.msra.mxu0 0.0
    %1583 = vmatprep.subr.mxu0 0.0
    %1584 = vmatpush1.msra.mxu0 0.0
    %1585 = vmatprep.subr.mxu0 0.0
    %1586 = vmatpush1.msra.mxu0 0.0
    %1587 = vmatprep.subr.mxu0 0.0
    %1588 = vmatpush1.msra.mxu0 0.0
    %1589 = vmatprep.subr.mxu0 0.0
    %1590 = vmatpush1.msra.mxu0 0.0
    %1591 = vmatprep.mubr.f32.mxu0 0.0
    %1592 = vmatmul.mubr.f32.gmra.mrb[0].mxu0 %v1504
    %v1593 = vpop.f32.mrb[0].mxu0
    %v1594 = vadd.f32 0.0, %v1593
    %v1595 = vpop.f32.mrb[0].mxu0
    %1596 = vmatprep.mubr.f32.mxu0 0.0
    %1597 = vmatmul.mubr.f32.gmra.mrb[0].mxu0 %v1507
    %v1598 = vpop.f32.mrb[0].mxu0
    %v1599 = vadd.f32 0.0, %v1598
    %v1600 = vpop.f32.mrb[0].mxu0
    %1601 = vmatprep.mubr.f32.mxu0 0.0
    %1602 = vmatmul.mubr.f32.gmra.mrb[0].mxu0 %v1510
    %v1603 = vpop.f32.mrb[0].mxu0
    %v1604 = vadd.f32 0.0, %v1603
    %v1605 = vpop.f32.mrb[0].mxu0
    %1606 = vmatprep.mubr.f32.mxu0 0.0
    %1607 = vmatmul.mubr.f32.gmra.mrb[0].mxu0 %v1513
    %v1608 = vpop.f32.mrb[0].mxu0
    %v1609 = vadd.f32 0.0, %v1608
    %v1610 = vpop.f32.mrb[0].mxu0
    %1611 = vmatprep.mubr.f32.mxu0 0.0
    %1612 = vmatmul.mubr.f32.gmra.mrb[0].mxu0 %v1516
    %v1613 = vpop.f32.mrb[0].mxu0
    %v1614 = vadd.f32 0.0, %v1613
    %v1615 = vpop.f32.mrb[0].mxu0
    %1616 = vmatprep.mubr.f32.mxu0 0.0
    %1617 = vmatmul.mubr.f32.gmra.mrb[0].mxu0 %v1519
    %v1618 = vpop.f32.mrb[0].mxu0
    %v1619 = vadd.f32 0.0, %v1618
    %v1620 = vpop.f32.mrb[0].mxu0
    %1621 = vmatprep.mubr.f32.mxu0 0.0
    %1622 = vmatmul.mubr.f32.gmra.mrb[0].mxu0 %v1522
    %v1623 = vpop.f32.mrb[0].mxu0
    %v1624 = vadd.f32 0.0, %v1623
    %v1625 = vpop.f32.mrb[0].mxu0
    %1626 = vmatprep.mubr.f32.mxu0 0.0
    %1627 = vmatmul.mubr.f32.gmra.mrb[0].mxu0 %v1525
    %v1628 = vpop.f32.mrb[0].mxu0
    %v1629 = vadd.f32 0.0, %v1628
    %v1630 = vpop.f32.mrb[0].mxu0
    %1631 = vdwg.mxu0
    %v1632 = vadd.f32 %v1082, %v1594
    %v1633 = vadd.f32 %v1082, %v1599
    %v1634 = vadd.f32 %v1082, %v1604
    %v1635 = vadd.f32 %v1082, %v1609
    %v1636 = vadd.f32 %v1082, %v1614
    %v1637 = vadd.f32 %v1082, %v1619
    %v1638 = vadd.f32 %v1082, %v1624
    %v1639 = vadd.f32 %v1082, %v1629
    %1640 = vrot.lane.b32.xlu0 %v1040, 112
    %v1641 = vpop.permute.xlu0 %1640
    %1642 = vrot.lane.b32.xlu0 %v1045, 112
    %v1643 = vpop.permute.xlu0 %1642
    %1644 = vrot.lane.b32.xlu0 %v1050, 112
    %v1645 = vpop.permute.xlu0 %1644
    %1646 = vrot.lane.b32.xlu0 %v1055, 112
    %v1647 = vpop.permute.xlu0 %1646
    %1648 = vrot.lane.b32.xlu0 %v1060, 112
    %v1649 = vpop.permute.xlu0 %1648
    %1650 = vrot.lane.b32.xlu0 %v1065, 112
    %v1651 = vpop.permute.xlu0 %1650
    %1652 = vrot.lane.b32.xlu0 %v1070, 112
    %v1653 = vpop.permute.xlu0 %1652
    %1654 = vrot.lane.b32.xlu0 %v1075, 112
    %v1655 = vpop.permute.xlu0 %1654
    %1656 = vrot.lane.b32.xlu0 %v1040, 80
    %v1657 = vpop.permute.xlu0 %1656
    %1658 = vrot.lane.b32.xlu0 %v1045, 80
    %v1659 = vpop.permute.xlu0 %1658
    %1660 = vrot.lane.b32.xlu0 %v1050, 80
    %v1661 = vpop.permute.xlu0 %1660
    %1662 = vrot.lane.b32.xlu0 %v1055, 80
    %v1663 = vpop.permute.xlu0 %1662
    %1664 = vrot.lane.b32.xlu0 %v1060, 80
    %v1665 = vpop.permute.xlu0 %1664
    %1666 = vrot.lane.b32.xlu0 %v1065, 80
    %v1667 = vpop.permute.xlu0 %1666
    %1668 = vrot.lane.b32.xlu0 %v1070, 80
    %v1669 = vpop.permute.xlu0 %1668
    %1670 = vrot.lane.b32.xlu0 %v1075, 80
    %v1671 = vpop.permute.xlu0 %1670
    %v1672 = vsel %vm1107, %v1641, 0
    %v1674 = vsel %vm1107, %v1643, 0
    %v1676 = vsel %vm1107, %v1645, 0
    %v1678 = vsel %vm1107, %v1647, 0
    %v1680 = vsel %vm1107, %v1649, 0
    %v1682 = vsel %vm1107, %v1651, 0
    %v1684 = vsel %vm1107, %v1653, 0
    %v1686 = vsel %vm1107, %v1655, 0
    %v1688 = vsel %vm1107, %v1657, 0
    %v1690 = vsel %vm1107, %v1659, 0
    %v1692 = vsel %vm1107, %v1661, 0
    %v1694 = vsel %vm1107, %v1663, 0
    %v1696 = vsel %vm1107, %v1665, 0
    %v1698 = vsel %vm1107, %v1667, 0
    %v1700 = vsel %vm1107, %v1669, 0
    %v1702 = vsel %vm1107, %v1671, 0
    %1704 = vmatprep.subr.mxu0 0.0
    %1705 = vmatpush1.xpose.msra.mxu0 %v1688
    %1706 = vmatprep.subr.mxu0 0.0
    %1707 = vmatpush1.xpose.msra.mxu0 %v1690
    %1708 = vmatprep.subr.mxu0 0.0
    %1709 = vmatpush1.xpose.msra.mxu0 %v1692
    %1710 = vmatprep.subr.mxu0 0.0
    %1711 = vmatpush1.xpose.msra.mxu0 %v1694
    %1712 = vmatprep.subr.mxu0 0.0
    %1713 = vmatpush1.xpose.msra.mxu0 %v1696
    %1714 = vmatprep.subr.mxu0 0.0
    %1715 = vmatpush1.xpose.msra.mxu0 %v1698
    %1716 = vmatprep.subr.mxu0 0.0
    %1717 = vmatpush1.xpose.msra.mxu0 %v1700
    %1718 = vmatprep.subr.mxu0 0.0
    %1719 = vmatpush1.xpose.msra.mxu0 %v1702
    %1720 = vmatprep.subr.mxu0 0.0
    %1721 = vmatpush1.xpose.msra.mxu0 0.0
    %1722 = vmatprep.subr.mxu0 0.0
    %1723 = vmatpush1.xpose.msra.mxu0 0.0
    %1724 = vmatprep.subr.mxu0 0.0
    %1725 = vmatpush1.xpose.msra.mxu0 0.0
    %1726 = vmatprep.subr.mxu0 0.0
    %1727 = vmatpush1.xpose.msra.mxu0 0.0
    %1728 = vmatprep.subr.mxu0 0.0
    %1729 = vmatpush1.xpose.msra.mxu0 0.0
    %1730 = vmatprep.subr.mxu0 0.0
    %1731 = vmatpush1.xpose.msra.mxu0 0.0
    %1732 = vmatprep.subr.mxu0 0.0
    %1733 = vmatpush1.xpose.msra.mxu0 0.0
    %1734 = vmatprep.subr.mxu0 0.0
    %1735 = vmatpush1.xpose.msra.mxu0 0.0
    %1736 = vmatprep.subr.mxu0 0.0
    %1737 = vmatpush1.xpose.msra.mxu0 0.0
    %1738 = vmatprep.subr.mxu0 0.0
    %1739 = vmatpush1.xpose.msra.mxu0 0.0
    %1740 = vmatprep.subr.mxu0 0.0
    %1741 = vmatpush1.xpose.msra.mxu0 0.0
    %1742 = vmatprep.subr.mxu0 0.0
    %1743 = vmatpush1.xpose.msra.mxu0 0.0
    %1744 = vmatprep.subr.mxu0 0.0
    %1745 = vmatpush1.xpose.msra.mxu0 0.0
    %1746 = vmatprep.subr.mxu0 0.0
    %1747 = vmatpush1.xpose.msra.mxu0 0.0
    %1748 = vmatprep.subr.mxu0 0.0
    %1749 = vmatpush1.xpose.msra.mxu0 0.0
    %1750 = vmatprep.subr.mxu0 0.0
    %1751 = vmatpush1.xpose.msra.mxu0 0.0
    %1752 = vmatprep.subr.mxu0 0.0
    %1753 = vmatpush1.xpose.msra.mxu0 0.0
    %1754 = vmatprep.subr.mxu0 0.0
    %1755 = vmatpush1.xpose.msra.mxu0 0.0
    %1756 = vmatprep.subr.mxu0 0.0
    %1757 = vmatpush1.xpose.msra.mxu0 0.0
    %1758 = vmatprep.subr.mxu0 0.0
    %1759 = vmatpush1.xpose.msra.mxu0 0.0
    %1760 = vmatprep.subr.mxu0 0.0
    %1761 = vmatpush1.xpose.msra.mxu0 0.0
    %1762 = vmatprep.subr.mxu0 0.0
    %1763 = vmatpush1.xpose.msra.mxu0 0.0
    %1764 = vmatprep.subr.mxu0 0.0
    %1765 = vmatpush1.xpose.msra.mxu0 0.0
    %1766 = vmatprep.subr.mxu0 0.0
    %1767 = vmatpush1.xpose.msra.mxu0 0.0
    %1768 = vmatprep.mubr.f32.mxu0 0.0
    %1769 = vmatmul.mubr.f32.gmra.mrb[0].mxu0 %v1672
    %v1770 = vpop.f32.mrb[0].mxu0
    %v1771 = vadd.f32 0.0, %v1770
    %v1772 = vpop.f32.mrb[0].mxu0
    %1773 = vmatprep.mubr.f32.mxu0 0.0
    %1774 = vmatmul.mubr.f32.gmra.mrb[0].mxu0 %v1674
    %v1775 = vpop.f32.mrb[0].mxu0
    %v1776 = vadd.f32 0.0, %v1775
    %v1777 = vpop.f32.mrb[0].mxu0
    %1778 = vmatprep.mubr.f32.mxu0 0.0
    %1779 = vmatmul.mubr.f32.gmra.mrb[0].mxu0 %v1676
    %v1780 = vpop.f32.mrb[0].mxu0
    %v1781 = vadd.f32 0.0, %v1780
    %v1782 = vpop.f32.mrb[0].mxu0
    %1783 = vmatprep.mubr.f32.mxu0 0.0
    %1784 = vmatmul.mubr.f32.gmra.mrb[0].mxu0 %v1678
    %v1785 = vpop.f32.mrb[0].mxu0
    %v1786 = vadd.f32 0.0, %v1785
    %v1787 = vpop.f32.mrb[0].mxu0
    %1788 = vmatprep.mubr.f32.mxu0 0.0
    %1789 = vmatmul.mubr.f32.gmra.mrb[0].mxu0 %v1680
    %v1790 = vpop.f32.mrb[0].mxu0
    %v1791 = vadd.f32 0.0, %v1790
    %v1792 = vpop.f32.mrb[0].mxu0
    %1793 = vmatprep.mubr.f32.mxu0 0.0
    %1794 = vmatmul.mubr.f32.gmra.mrb[0].mxu0 %v1682
    %v1795 = vpop.f32.mrb[0].mxu0
    %v1796 = vadd.f32 0.0, %v1795
    %v1797 = vpop.f32.mrb[0].mxu0
    %1798 = vmatprep.mubr.f32.mxu0 0.0
    %1799 = vmatmul.mubr.f32.gmra.mrb[0].mxu0 %v1684
    %v1800 = vpop.f32.mrb[0].mxu0
    %v1801 = vadd.f32 0.0, %v1800
    %v1802 = vpop.f32.mrb[0].mxu0
    %1803 = vmatprep.mubr.f32.mxu0 0.0
    %1804 = vmatmul.mubr.f32.gmra.mrb[0].mxu0 %v1686
    %v1805 = vpop.f32.mrb[0].mxu0
    %v1806 = vadd.f32 0.0, %v1805
    %v1807 = vpop.f32.mrb[0].mxu0
    %1808 = vdwg.mxu0
    %v1809 = vmul.f32 %v1771, 0.25
    %v1810 = vmul.f32 %v1776, 0.25
    %v1811 = vmul.f32 %v1781, 0.25
    %v1812 = vmul.f32 %v1786, 0.25
    %v1813 = vmul.f32 %v1791, 0.25
    %v1814 = vmul.f32 %v1796, 0.25
    %v1815 = vmul.f32 %v1801, 0.25
    %v1816 = vmul.f32 %v1806, 0.25
    %v1817 = vadd.f32 %v1809, %v797
    %v1818 = vadd.f32 %v1810, %v798
    %v1819 = vadd.f32 %v1811, %v799
    %v1820 = vadd.f32 %v1812, %v800
    %v1821 = vadd.f32 %v1813, %v801
    %v1822 = vadd.f32 %v1814, %v802
    %v1823 = vadd.f32 %v1815, %v803
    %v1824 = vadd.f32 %v1816, %v804
    %v1825 = vsel %vm1261, %v1817, -inf
    %1826 = vmax.xlane.f32.xlu0 %v1825
    %v1827 = vpop.xlane.xlu0 %1826
    %v1828 = vsel %vm1261, %v1818, -inf
    %1829 = vmax.xlane.f32.xlu0 %v1828
    %v1830 = vpop.xlane.xlu0 %1829
    %v1831 = vsel %vm1261, %v1819, -inf
    %1832 = vmax.xlane.f32.xlu0 %v1831
    %v1833 = vpop.xlane.xlu0 %1832
    %v1834 = vsel %vm1261, %v1820, -inf
    %1835 = vmax.xlane.f32.xlu0 %v1834
    %v1836 = vpop.xlane.xlu0 %1835
    %v1837 = vsel %vm1261, %v1821, -inf
    %1838 = vmax.xlane.f32.xlu0 %v1837
    %v1839 = vpop.xlane.xlu0 %1838
    %v1840 = vsel %vm1261, %v1822, -inf
    %1841 = vmax.xlane.f32.xlu0 %v1840
    %v1842 = vpop.xlane.xlu0 %1841
    %v1843 = vsel %vm1261, %v1823, -inf
    %1844 = vmax.xlane.f32.xlu0 %v1843
    %v1845 = vpop.xlane.xlu0 %1844
    %v1846 = vsel %vm1261, %v1824, -inf
    %1847 = vmax.xlane.f32.xlu0 %v1846
    %v1848 = vpop.xlane.xlu0 %1847
    %v1849 = vsub.f32 %v1817, %v1827
    %v1850 = vsub.f32 %v1818, %v1830
    %v1851 = vsub.f32 %v1819, %v1833
    %v1852 = vsub.f32 %v1820, %v1836
    %v1853 = vsub.f32 %v1821, %v1839
    %v1854 = vsub.f32 %v1822, %v1842
    %v1855 = vsub.f32 %v1823, %v1845
    %v1856 = vsub.f32 %v1824, %v1848
    %v1857 = vmul.f32 %v1849, 1.442695
    %v1858 = vpow.pop %v1857
    %v1859 = vmul.f32 %v1850, 1.442695
    %v1860 = vpow.pop %v1859
    %v1861 = vmul.f32 %v1851, 1.442695
    %v1862 = vpow.pop %v1861
    %v1863 = vmul.f32 %v1852, 1.442695
    %v1864 = vpow.pop %v1863
    %v1865 = vmul.f32 %v1853, 1.442695
    %v1866 = vpow.pop %v1865
    %v1867 = vmul.f32 %v1854, 1.442695
    %v1868 = vpow.pop %v1867
    %v1869 = vmul.f32 %v1855, 1.442695
    %v1870 = vpow.pop %v1869
    %v1871 = vmul.f32 %v1856, 1.442695
    %v1872 = vpow.pop %v1871
    %v1873 = vsel %vm1261, %v1858, 0.0
    %1874 = vadd.xlane.f32.xlu0 %v1873
    %v1875 = vpop.xlane.xlu0 %1874
    %v1876 = vsel %vm1261, %v1860, 0.0
    %1877 = vadd.xlane.f32.xlu0 %v1876
    %v1878 = vpop.xlane.xlu0 %1877
    %v1879 = vsel %vm1261, %v1862, 0.0
    %1880 = vadd.xlane.f32.xlu0 %v1879
    %v1881 = vpop.xlane.xlu0 %1880
    %v1882 = vsel %vm1261, %v1864, 0.0
    %1883 = vadd.xlane.f32.xlu0 %v1882
    %v1884 = vpop.xlane.xlu0 %1883
    %v1885 = vsel %vm1261, %v1866, 0.0
    %1886 = vadd.xlane.f32.xlu0 %v1885
    %v1887 = vpop.xlane.xlu0 %1886
    %v1888 = vsel %vm1261, %v1868, 0.0
    %1889 = vadd.xlane.f32.xlu0 %v1888
    %v1890 = vpop.xlane.xlu0 %1889
    %v1891 = vsel %vm1261, %v1870, 0.0
    %1892 = vadd.xlane.f32.xlu0 %v1891
    %v1893 = vpop.xlane.xlu0 %1892
    %v1894 = vsel %vm1261, %v1872, 0.0
    %1895 = vadd.xlane.f32.xlu0 %v1894
    %v1896 = vpop.xlane.xlu0 %1895
    %v1897 = vrcp.pop %v1875
    %v1898 = vrcp.pop %v1878
    %v1899 = vrcp.pop %v1881
    %v1900 = vrcp.pop %v1884
    %v1901 = vrcp.pop %v1887
    %v1902 = vrcp.pop %v1890
    %v1903 = vrcp.pop %v1893
    %v1904 = vrcp.pop %v1896
    %v1905 = vmul.f32 %v1858, %v1897
    %v1906 = vmul.f32 %v1860, %v1898
    %v1907 = vmul.f32 %v1862, %v1899
    %v1908 = vmul.f32 %v1864, %v1900
    %v1909 = vmul.f32 %v1866, %v1901
    %v1910 = vmul.f32 %v1868, %v1902
    %v1911 = vmul.f32 %v1870, %v1903
    %v1912 = vmul.f32 %v1872, %v1904
    %1913 = vrot.lane.b32.xlu0 %v1040, 48
    %v1914 = vpop.permute.xlu0 %1913
    %1915 = vrot.lane.b32.xlu0 %v1045, 48
    %v1916 = vpop.permute.xlu0 %1915
    %1917 = vrot.lane.b32.xlu0 %v1050, 48
    %v1918 = vpop.permute.xlu0 %1917
    %1919 = vrot.lane.b32.xlu0 %v1055, 48
    %v1920 = vpop.permute.xlu0 %1919
    %1921 = vrot.lane.b32.xlu0 %v1060, 48
    %v1922 = vpop.permute.xlu0 %1921
    %1923 = vrot.lane.b32.xlu0 %v1065, 48
    %v1924 = vpop.permute.xlu0 %1923
    %1925 = vrot.lane.b32.xlu0 %v1070, 48
    %v1926 = vpop.permute.xlu0 %1925
    %1927 = vrot.lane.b32.xlu0 %v1075, 48
    %v1928 = vpop.permute.xlu0 %1927
    %v1938 = vsel %vm1261, %v1905, 0
    %v1941 = vsel %vm1261, %v1906, 0
    %v1944 = vsel %vm1261, %v1907, 0
    %v1947 = vsel %vm1261, %v1908, 0
    %v1950 = vsel %vm1261, %v1909, 0
    %v1953 = vsel %vm1261, %v1910, 0
    %v1956 = vsel %vm1261, %v1911, 0
    %v1959 = vsel %vm1261, %v1912, 0
    %1961 = vmatprep.subr.mxu0 0.0
    %1962 = vmatpush1.msra.mxu0 %v1914
    %1963 = vmatprep.subr.mxu0 0.0
    %1964 = vmatpush1.msra.mxu0 %v1916
    %1965 = vmatprep.subr.mxu0 0.0
    %1966 = vmatpush1.msra.mxu0 %v1918
    %1967 = vmatprep.subr.mxu0 0.0
    %1968 = vmatpush1.msra.mxu0 %v1920
    %1969 = vmatprep.subr.mxu0 0.0
    %1970 = vmatpush1.msra.mxu0 %v1922
    %1971 = vmatprep.subr.mxu0 0.0
    %1972 = vmatpush1.msra.mxu0 %v1924
    %1973 = vmatprep.subr.mxu0 0.0
    %1974 = vmatpush1.msra.mxu0 %v1926
    %1975 = vmatprep.subr.mxu0 0.0
    %1976 = vmatpush1.msra.mxu0 %v1928
    %1977 = vmatprep.subr.mxu0 0.0
    %1978 = vmatpush1.msra.mxu0 0.0
    %1979 = vmatprep.subr.mxu0 0.0
    %1980 = vmatpush1.msra.mxu0 0.0
    %1981 = vmatprep.subr.mxu0 0.0
    %1982 = vmatpush1.msra.mxu0 0.0
    %1983 = vmatprep.subr.mxu0 0.0
    %1984 = vmatpush1.msra.mxu0 0.0
    %1985 = vmatprep.subr.mxu0 0.0
    %1986 = vmatpush1.msra.mxu0 0.0
    %1987 = vmatprep.subr.mxu0 0.0
    %1988 = vmatpush1.msra.mxu0 0.0
    %1989 = vmatprep.subr.mxu0 0.0
    %1990 = vmatpush1.msra.mxu0 0.0
    %1991 = vmatprep.subr.mxu0 0.0
    %1992 = vmatpush1.msra.mxu0 0.0
    %1993 = vmatprep.subr.mxu0 0.0
    %1994 = vmatpush1.msra.mxu0 0.0
    %1995 = vmatprep.subr.mxu0 0.0
    %1996 = vmatpush1.msra.mxu0 0.0
    %1997 = vmatprep.subr.mxu0 0.0
    %1998 = vmatpush1.msra.mxu0 0.0
    %1999 = vmatprep.subr.mxu0 0.0
    %2000 = vmatpush1.msra.mxu0 0.0
    %2001 = vmatprep.subr.mxu0 0.0
    %2002 = vmatpush1.msra.mxu0 0.0
    %2003 = vmatprep.subr.mxu0 0.0
    %2004 = vmatpush1.msra.mxu0 0.0
    %2005 = vmatprep.subr.mxu0 0.0
    %2006 = vmatpush1.msra.mxu0 0.0
    %2007 = vmatprep.subr.mxu0 0.0
    %2008 = vmatpush1.msra.mxu0 0.0
    %2009 = vmatprep.subr.mxu0 0.0
    %2010 = vmatpush1.msra.mxu0 0.0
    %2011 = vmatprep.subr.mxu0 0.0
    %2012 = vmatpush1.msra.mxu0 0.0
    %2013 = vmatprep.subr.mxu0 0.0
    %2014 = vmatpush1.msra.mxu0 0.0
    %2015 = vmatprep.subr.mxu0 0.0
    %2016 = vmatpush1.msra.mxu0 0.0
    %2017 = vmatprep.subr.mxu0 0.0
    %2018 = vmatpush1.msra.mxu0 0.0
    %2019 = vmatprep.subr.mxu0 0.0
    %2020 = vmatpush1.msra.mxu0 0.0
    %2021 = vmatprep.subr.mxu0 0.0
    %2022 = vmatpush1.msra.mxu0 0.0
    %2023 = vmatprep.subr.mxu0 0.0
    %2024 = vmatpush1.msra.mxu0 0.0
    %2025 = vmatprep.mubr.f32.mxu0 0.0
    %2026 = vmatmul.mubr.f32.gmra.mrb[0].mxu0 %v1938
    %v2027 = vpop.f32.mrb[0].mxu0
    %v2028 = vadd.f32 0.0, %v2027
    %v2029 = vpop.f32.mrb[0].mxu0
    %2030 = vmatprep.mubr.f32.mxu0 0.0
    %2031 = vmatmul.mubr.f32.gmra.mrb[0].mxu0 %v1941
    %v2032 = vpop.f32.mrb[0].mxu0
    %v2033 = vadd.f32 0.0, %v2032
    %v2034 = vpop.f32.mrb[0].mxu0
    %2035 = vmatprep.mubr.f32.mxu0 0.0
    %2036 = vmatmul.mubr.f32.gmra.mrb[0].mxu0 %v1944
    %v2037 = vpop.f32.mrb[0].mxu0
    %v2038 = vadd.f32 0.0, %v2037
    %v2039 = vpop.f32.mrb[0].mxu0
    %2040 = vmatprep.mubr.f32.mxu0 0.0
    %2041 = vmatmul.mubr.f32.gmra.mrb[0].mxu0 %v1947
    %v2042 = vpop.f32.mrb[0].mxu0
    %v2043 = vadd.f32 0.0, %v2042
    %v2044 = vpop.f32.mrb[0].mxu0
    %2045 = vmatprep.mubr.f32.mxu0 0.0
    %2046 = vmatmul.mubr.f32.gmra.mrb[0].mxu0 %v1950
    %v2047 = vpop.f32.mrb[0].mxu0
    %v2048 = vadd.f32 0.0, %v2047
    %v2049 = vpop.f32.mrb[0].mxu0
    %2050 = vmatprep.mubr.f32.mxu0 0.0
    %2051 = vmatmul.mubr.f32.gmra.mrb[0].mxu0 %v1953
    %v2052 = vpop.f32.mrb[0].mxu0
    %v2053 = vadd.f32 0.0, %v2052
    %v2054 = vpop.f32.mrb[0].mxu0
    %2055 = vmatprep.mubr.f32.mxu0 0.0
    %2056 = vmatmul.mubr.f32.gmra.mrb[0].mxu0 %v1956
    %v2057 = vpop.f32.mrb[0].mxu0
    %v2058 = vadd.f32 0.0, %v2057
    %v2059 = vpop.f32.mrb[0].mxu0
    %2060 = vmatprep.mubr.f32.mxu0 0.0
    %2061 = vmatmul.mubr.f32.gmra.mrb[0].mxu0 %v1959
    %v2062 = vpop.f32.mrb[0].mxu0
    %v2063 = vadd.f32 0.0, %v2062
    %v2064 = vpop.f32.mrb[0].mxu0
    %2065 = vdwg.mxu0
    %v2067 = vsel %vm1107, %v2028, 0
    %v2070 = vsel %vm1107, %v2033, 0
    %v2073 = vsel %vm1107, %v2038, 0
    %v2076 = vsel %vm1107, %v2043, 0
    %v2079 = vsel %vm1107, %v2048, 0
    %v2082 = vsel %vm1107, %v2053, 0
    %v2085 = vsel %vm1107, %v2058, 0
    %v2088 = vsel %vm1107, %v2063, 0
    %2090 = vmatprep.subr.mxu0 0.0
    %2091 = vmatpush1.msra.mxu0 %v1080
    %2092 = vmatprep.subr.mxu0 0.0
    %2093 = vmatpush1.msra.mxu0 %v1081
    %2094 = vmatprep.subr.mxu0 0.0
    %2095 = vmatpush1.msra.mxu0 0.0
    %2096 = vmatprep.subr.mxu0 0.0
    %2097 = vmatpush1.msra.mxu0 0.0
    %2098 = vmatprep.subr.mxu0 0.0
    %2099 = vmatpush1.msra.mxu0 0.0
    %2100 = vmatprep.subr.mxu0 0.0
    %2101 = vmatpush1.msra.mxu0 0.0
    %2102 = vmatprep.subr.mxu0 0.0
    %2103 = vmatpush1.msra.mxu0 0.0
    %2104 = vmatprep.subr.mxu0 0.0
    %2105 = vmatpush1.msra.mxu0 0.0
    %2106 = vmatprep.subr.mxu0 0.0
    %2107 = vmatpush1.msra.mxu0 0.0
    %2108 = vmatprep.subr.mxu0 0.0
    %2109 = vmatpush1.msra.mxu0 0.0
    %2110 = vmatprep.subr.mxu0 0.0
    %2111 = vmatpush1.msra.mxu0 0.0
    %2112 = vmatprep.subr.mxu0 0.0
    %2113 = vmatpush1.msra.mxu0 0.0
    %2114 = vmatprep.subr.mxu0 0.0
    %2115 = vmatpush1.msra.mxu0 0.0
    %2116 = vmatprep.subr.mxu0 0.0
    %2117 = vmatpush1.msra.mxu0 0.0
    %2118 = vmatprep.subr.mxu0 0.0
    %2119 = vmatpush1.msra.mxu0 0.0
    %2120 = vmatprep.subr.mxu0 0.0
    %2121 = vmatpush1.msra.mxu0 0.0
    %2122 = vmatprep.subr.mxu0 0.0
    %2123 = vmatpush1.msra.mxu0 0.0
    %2124 = vmatprep.subr.mxu0 0.0
    %2125 = vmatpush1.msra.mxu0 0.0
    %2126 = vmatprep.subr.mxu0 0.0
    %2127 = vmatpush1.msra.mxu0 0.0
    %2128 = vmatprep.subr.mxu0 0.0
    %2129 = vmatpush1.msra.mxu0 0.0
    %2130 = vmatprep.subr.mxu0 0.0
    %2131 = vmatpush1.msra.mxu0 0.0
    %2132 = vmatprep.subr.mxu0 0.0
    %2133 = vmatpush1.msra.mxu0 0.0
    %2134 = vmatprep.subr.mxu0 0.0
    %2135 = vmatpush1.msra.mxu0 0.0
    %2136 = vmatprep.subr.mxu0 0.0
    %2137 = vmatpush1.msra.mxu0 0.0
    %2138 = vmatprep.subr.mxu0 0.0
    %2139 = vmatpush1.msra.mxu0 0.0
    %2140 = vmatprep.subr.mxu0 0.0
    %2141 = vmatpush1.msra.mxu0 0.0
    %2142 = vmatprep.subr.mxu0 0.0
    %2143 = vmatpush1.msra.mxu0 0.0
    %2144 = vmatprep.subr.mxu0 0.0
    %2145 = vmatpush1.msra.mxu0 0.0
    %2146 = vmatprep.subr.mxu0 0.0
    %2147 = vmatpush1.msra.mxu0 0.0
    %2148 = vmatprep.subr.mxu0 0.0
    %2149 = vmatpush1.msra.mxu0 0.0
    %2150 = vmatprep.subr.mxu0 0.0
    %2151 = vmatpush1.msra.mxu0 0.0
    %2152 = vmatprep.subr.mxu0 0.0
    %2153 = vmatpush1.msra.mxu0 0.0
    %2154 = vmatprep.mubr.f32.mxu0 0.0
    %2155 = vmatmul.mubr.f32.gmra.mrb[0].mxu0 %v2067
    %v2156 = vpop.f32.mrb[0].mxu0
    %v2157 = vadd.f32 0.0, %v2156
    %v2158 = vpop.f32.mrb[0].mxu0
    %2159 = vmatprep.mubr.f32.mxu0 0.0
    %2160 = vmatmul.mubr.f32.gmra.mrb[0].mxu0 %v2070
    %v2161 = vpop.f32.mrb[0].mxu0
    %v2162 = vadd.f32 0.0, %v2161
    %v2163 = vpop.f32.mrb[0].mxu0
    %2164 = vmatprep.mubr.f32.mxu0 0.0
    %2165 = vmatmul.mubr.f32.gmra.mrb[0].mxu0 %v2073
    %v2166 = vpop.f32.mrb[0].mxu0
    %v2167 = vadd.f32 0.0, %v2166
    %v2168 = vpop.f32.mrb[0].mxu0
    %2169 = vmatprep.mubr.f32.mxu0 0.0
    %2170 = vmatmul.mubr.f32.gmra.mrb[0].mxu0 %v2076
    %v2171 = vpop.f32.mrb[0].mxu0
    %v2172 = vadd.f32 0.0, %v2171
    %v2173 = vpop.f32.mrb[0].mxu0
    %2174 = vmatprep.mubr.f32.mxu0 0.0
    %2175 = vmatmul.mubr.f32.gmra.mrb[0].mxu0 %v2079
    %v2176 = vpop.f32.mrb[0].mxu0
    %v2177 = vadd.f32 0.0, %v2176
    %v2178 = vpop.f32.mrb[0].mxu0
    %2179 = vmatprep.mubr.f32.mxu0 0.0
    %2180 = vmatmul.mubr.f32.gmra.mrb[0].mxu0 %v2082
    %v2181 = vpop.f32.mrb[0].mxu0
    %v2182 = vadd.f32 0.0, %v2181
    %v2183 = vpop.f32.mrb[0].mxu0
    %2184 = vmatprep.mubr.f32.mxu0 0.0
    %2185 = vmatmul.mubr.f32.gmra.mrb[0].mxu0 %v2085
    %v2186 = vpop.f32.mrb[0].mxu0
    %v2187 = vadd.f32 0.0, %v2186
    %v2188 = vpop.f32.mrb[0].mxu0
    %2189 = vmatprep.mubr.f32.mxu0 0.0
    %2190 = vmatmul.mubr.f32.gmra.mrb[0].mxu0 %v2088
    %v2191 = vpop.f32.mrb[0].mxu0
    %v2192 = vadd.f32 0.0, %v2191
    %v2193 = vpop.f32.mrb[0].mxu0
    %2194 = vdwg.mxu0
    %v2195 = vadd.f32 %v1632, %v2157
    %v2196 = vadd.f32 %v1633, %v2162
    %v2197 = vadd.f32 %v1634, %v2167
    %v2198 = vadd.f32 %v1635, %v2172
    %v2199 = vadd.f32 %v1636, %v2177
    %v2200 = vadd.f32 %v1637, %v2182
    %v2201 = vadd.f32 %v1638, %v2187
    %v2202 = vadd.f32 %v1639, %v2192
    %v2203 = vadd.f32 %v775, %v2195
    %v2204 = vadd.f32 %v779, %v2196
    %v2205 = vadd.f32 %v782, %v2197
    %v2206 = vadd.f32 %v785, %v2198
    %v2207 = vadd.f32 %v776, %v2199
    %v2208 = vadd.f32 %v789, %v2200
    %v2209 = vadd.f32 %v792, %v2201
    %v2210 = vadd.f32 %v795, %v2202
    %v2211 = vld [vmem:[#allocation7 + $0x11] ss:$0 sm:$0xff]
    %v2212 = vld [vmem:[#allocation7 + $0x12] ss:$0 sm:$0xff]
    %v2213 = vsel %vm72, %v2203, 0.0
    %2214 = vadd.xlane.f32.xlu0 %v2213
    %v2215 = vpop.xlane.xlu0 %2214
    %v2216 = vsel %vm72, %v2204, 0.0
    %2217 = vadd.xlane.f32.xlu0 %v2216
    %v2218 = vpop.xlane.xlu0 %2217
    %v2219 = vsel %vm72, %v2205, 0.0
    %2220 = vadd.xlane.f32.xlu0 %v2219
    %v2221 = vpop.xlane.xlu0 %2220
    %v2222 = vsel %vm72, %v2206, 0.0
    %2223 = vadd.xlane.f32.xlu0 %v2222
    %v2224 = vpop.xlane.xlu0 %2223
    %v2225 = vsel %vm72, %v2207, 0.0
    %2226 = vadd.xlane.f32.xlu0 %v2225
    %v2227 = vpop.xlane.xlu0 %2226
    %v2228 = vsel %vm72, %v2208, 0.0
    %2229 = vadd.xlane.f32.xlu0 %v2228
    %v2230 = vpop.xlane.xlu0 %2229
    %v2231 = vsel %vm72, %v2209, 0.0
    %2232 = vadd.xlane.f32.xlu0 %v2231
    %v2233 = vpop.xlane.xlu0 %2232
    %v2234 = vsel %vm72, %v2210, 0.0
    %2235 = vadd.xlane.f32.xlu0 %v2234
    %v2236 = vpop.xlane.xlu0 %2235
    %v2237 = vmul.f32 %v2215, %v831
    %v2238 = vmul.f32 %v2218, %v831
    %v2239 = vmul.f32 %v2221, %v831
    %v2240 = vmul.f32 %v2224, %v831
    %v2241 = vmul.f32 %v2227, %v831
    %v2242 = vmul.f32 %v2230, %v831
    %v2243 = vmul.f32 %v2233, %v831
    %v2244 = vmul.f32 %v2236, %v831
    %v2245 = vmul.f32 %v2203, %v2203
    %v2246 = vmul.f32 %v2204, %v2204
    %v2247 = vmul.f32 %v2205, %v2205
    %v2248 = vmul.f32 %v2206, %v2206
    %v2249 = vmul.f32 %v2207, %v2207
    %v2250 = vmul.f32 %v2208, %v2208
    %v2251 = vmul.f32 %v2209, %v2209
    %v2252 = vmul.f32 %v2210, %v2210
    %v2253 = vsel %vm72, %v2245, 0.0
    %2254 = vadd.xlane.f32.xlu0 %v2253
    %v2255 = vpop.xlane.xlu0 %2254
    %v2256 = vsel %vm72, %v2246, 0.0
    %2257 = vadd.xlane.f32.xlu0 %v2256
    %v2258 = vpop.xlane.xlu0 %2257
    %v2259 = vsel %vm72, %v2247, 0.0
    %2260 = vadd.xlane.f32.xlu0 %v2259
    %v2261 = vpop.xlane.xlu0 %2260
    %v2262 = vsel %vm72, %v2248, 0.0
    %2263 = vadd.xlane.f32.xlu0 %v2262
    %v2264 = vpop.xlane.xlu0 %2263
    %v2265 = vsel %vm72, %v2249, 0.0
    %2266 = vadd.xlane.f32.xlu0 %v2265
    %v2267 = vpop.xlane.xlu0 %2266
    %v2268 = vsel %vm72, %v2250, 0.0
    %2269 = vadd.xlane.f32.xlu0 %v2268
    %v2270 = vpop.xlane.xlu0 %2269
    %v2271 = vsel %vm72, %v2251, 0.0
    %2272 = vadd.xlane.f32.xlu0 %v2271
    %v2273 = vpop.xlane.xlu0 %2272
    %v2274 = vsel %vm72, %v2252, 0.0
    %2275 = vadd.xlane.f32.xlu0 %v2274
    %v2276 = vpop.xlane.xlu0 %2275
    %v2277 = vmul.f32 %v2255, %v831
    %v2278 = vmul.f32 %v2258, %v831
    %v2279 = vmul.f32 %v2261, %v831
    %v2280 = vmul.f32 %v2264, %v831
    %v2281 = vmul.f32 %v2267, %v831
    %v2282 = vmul.f32 %v2270, %v831
    %v2283 = vmul.f32 %v2273, %v831
    %v2284 = vmul.f32 %v2276, %v831
    %v2285 = vsub.f32 %v2203, %v2237
    %v2286 = vsub.f32 %v2204, %v2238
    %v2287 = vsub.f32 %v2205, %v2239
    %v2288 = vsub.f32 %v2206, %v2240
    %v2289 = vsub.f32 %v2207, %v2241
    %v2290 = vsub.f32 %v2208, %v2242
    %v2291 = vsub.f32 %v2209, %v2243
    %v2292 = vsub.f32 %v2210, %v2244
    %v2293 = vmul.f32 %v2237, %v2237
    %v2294 = vmul.f32 %v2238, %v2238
    %v2295 = vmul.f32 %v2239, %v2239
    %v2296 = vmul.f32 %v2240, %v2240
    %v2297 = vmul.f32 %v2241, %v2241
    %v2298 = vmul.f32 %v2242, %v2242
    %v2299 = vmul.f32 %v2243, %v2243
    %v2300 = vmul.f32 %v2244, %v2244
    %v2301 = vsub.f32 %v2277, %v2293
    %v2302 = vsub.f32 %v2278, %v2294
    %v2303 = vsub.f32 %v2279, %v2295
    %v2304 = vsub.f32 %v2280, %v2296
    %v2305 = vsub.f32 %v2281, %v2297
    %v2306 = vsub.f32 %v2282, %v2298
    %v2307 = vsub.f32 %v2283, %v2299
    %v2308 = vsub.f32 %v2284, %v2300
    %v2309 = vadd.f32 %v2301, 1e-05
    %v2310 = vadd.f32 %v2302, 1e-05
    %v2311 = vadd.f32 %v2303, 1e-05
    %v2312 = vadd.f32 %v2304, 1e-05
    %v2313 = vadd.f32 %v2305, 1e-05
    %v2314 = vadd.f32 %v2306, 1e-05
    %v2315 = vadd.f32 %v2307, 1e-05
    %v2316 = vadd.f32 %v2308, 1e-05
    %v2317 = vrsqrt.pop %v2309
    %v2318 = vrsqrt.pop %v2310
    %v2319 = vrsqrt.pop %v2311
    %v2320 = vrsqrt.pop %v2312
    %v2321 = vrsqrt.pop %v2313
    %v2322 = vrsqrt.pop %v2314
    %v2323 = vrsqrt.pop %v2315
    %v2324 = vrsqrt.pop %v2316
    %v2325 = vmul.f32 %v2285, %v2317
    %v2326 = vmul.f32 %v2286, %v2318
    %v2327 = vmul.f32 %v2287, %v2319
    %v2328 = vmul.f32 %v2288, %v2320
    %v2329 = vmul.f32 %v2289, %v2321
    %v2330 = vmul.f32 %v2290, %v2322
    %v2331 = vmul.f32 %v2291, %v2323
    %v2332 = vmul.f32 %v2292, %v2324
    %v2333 = vmul.f32 %v2325, %v2211
    %v2334 = vmul.f32 %v2326, %v2211
    %v2335 = vmul.f32 %v2327, %v2211
    %v2336 = vmul.f32 %v2328, %v2211
    %v2337 = vmul.f32 %v2329, %v2211
    %v2338 = vmul.f32 %v2330, %v2211
    %v2339 = vmul.f32 %v2331, %v2211
    %v2340 = vmul.f32 %v2332, %v2211
    %v2341 = vadd.f32 %v2333, %v2212
    %v2342 = vadd.f32 %v2334, %v2212
    %v2343 = vadd.f32 %v2335, %v2212
    %v2344 = vadd.f32 %v2336, %v2212
    %v2345 = vadd.f32 %v2337, %v2212
    %v2346 = vadd.f32 %v2338, %v2212
    %v2347 = vadd.f32 %v2339, %v2212
    %v2348 = vadd.f32 %v2340, %v2212
    %v2349 = vld [vmem:[%s3 + $0x10] sm:$0xff]
    %v2350 = vld [vmem:[%s3 + $0x30] sm:$0xff]
    %v2351 = vld [vmem:[%s3 + $0x50] sm:$0xff]
    %v2352 = vld [vmem:[%s3 + $0x70] sm:$0xff]
    %v2353 = vld [vmem:[#allocation7 + $0x15] ss:$0 sm:$0xff]
    %v2355 = vsel %vm72, %v2341, 0
    %v2358 = vsel %vm72, %v2342, 0
    %v2361 = vsel %vm72, %v2343, 0
    %v2364 = vsel %vm72, %v2344, 0
    %v2367 = vsel %vm72, %v2345, 0
    %v2370 = vsel %vm72, %v2346, 0
    %v2373 = vsel %vm72, %v2347, 0
    %v2376 = vsel %vm72, %v2348, 0
    %2378 = vmatprep.subr.mxu0 0.0
    %2379 = vmatpush1.msra.mxu0 %v2349
    %2380 = vmatprep.subr.mxu0 0.0
    %2381 = vmatpush1.msra.mxu0 %v2350
    %2382 = vmatprep.subr.mxu0 0.0
    %2383 = vmatpush1.msra.mxu0 %v2351
    %2384 = vmatprep.subr.mxu0 0.0
    %2385 = vmatpush1.msra.mxu0 %v2352
    %2386 = vmatprep.subr.mxu0 0.0
    %2387 = vmatpush1.msra.mxu0 0.0
    %2388 = vmatprep.subr.mxu0 0.0
    %2389 = vmatpush1.msra.mxu0 0.0
    %2390 = vmatprep.subr.mxu0 0.0
    %2391 = vmatpush1.msra.mxu0 0.0
    %2392 = vmatprep.subr.mxu0 0.0
    %2393 = vmatpush1.msra.mxu0 0.0
    %2394 = vmatprep.subr.mxu0 0.0
    %2395 = vmatpush1.msra.mxu0 0.0
    %2396 = vmatprep.subr.mxu0 0.0
    %2397 = vmatpush1.msra.mxu0 0.0
    %2398 = vmatprep.subr.mxu0 0.0
    %2399 = vmatpush1.msra.mxu0 0.0
    %2400 = vmatprep.subr.mxu0 0.0
    %2401 = vmatpush1.msra.mxu0 0.0
    %2402 = vmatprep.subr.mxu0 0.0
    %2403 = vmatpush1.msra.mxu0 0.0
    %2404 = vmatprep.subr.mxu0 0.0
    %2405 = vmatpush1.msra.mxu0 0.0
    %2406 = vmatprep.subr.mxu0 0.0
    %2407 = vmatpush1.msra.mxu0 0.0
    %2408 = vmatprep.subr.mxu0 0.0
    %2409 = vmatpush1.msra.mxu0 0.0
    %2410 = vmatprep.subr.mxu0 0.0
    %2411 = vmatpush1.msra.mxu0 0.0
    %2412 = vmatprep.subr.mxu0 0.0
    %2413 = vmatpush1.msra.mxu0 0.0
    %2414 = vmatprep.subr.mxu0 0.0
    %2415 = vmatpush1.msra.mxu0 0.0
    %2416 = vmatprep.subr.mxu0 0.0
    %2417 = vmatpush1.msra.mxu0 0.0
    %2418 = vmatprep.subr.mxu0 0.0
    %2419 = vmatpush1.msra.mxu0 0.0
    %2420 = vmatprep.subr.mxu0 0.0
    %2421 = vmatpush1.msra.mxu0 0.0
    %2422 = vmatprep.subr.mxu0 0.0
    %2423 = vmatpush1.msra.mxu0 0.0
    %2424 = vmatprep.subr.mxu0 0.0
    %2425 = vmatpush1.msra.mxu0 0.0
    %2426 = vmatprep.subr.mxu0 0.0
    %2427 = vmatpush1.msra.mxu0 0.0
    %2428 = vmatprep.subr.mxu0 0.0
    %2429 = vmatpush1.msra.mxu0 0.0
    %2430 = vmatprep.subr.mxu0 0.0
    %2431 = vmatpush1.msra.mxu0 0.0
    %2432 = vmatprep.subr.mxu0 0.0
    %2433 = vmatpush1.msra.mxu0 0.0
    %2434 = vmatprep.subr.mxu0 0.0
    %2435 = vmatpush1.msra.mxu0 0.0
    %2436 = vmatprep.subr.mxu0 0.0
    %2437 = vmatpush1.msra.mxu0 0.0
    %2438 = vmatprep.subr.mxu0 0.0
    %2439 = vmatpush1.msra.mxu0 0.0
    %2440 = vmatprep.subr.mxu0 0.0
    %2441 = vmatpush1.msra.mxu0 0.0
    %2442 = vmatprep.mubr.f32.mxu0 0.0
    %2443 = vmatmul.mubr.f32.gmra.mrb[0].mxu0 %v2355
    %v2444 = vpop.f32.mrb[0].mxu0
    %v2445 = vadd.f32 %v2353, %v2444
    %v2446 = vpop.f32.mrb[0].mxu0
    %2447 = vmatprep.mubr.f32.mxu0 0.0
    %2448 = vmatmul.mubr.f32.gmra.mrb[0].mxu0 %v2358
    %v2449 = vpop.f32.mrb[0].mxu0
    %v2450 = vadd.f32 %v2353, %v2449
    %v2451 = vpop.f32.mrb[0].mxu0
    %2452 = vmatprep.mubr.f32.mxu0 0.0
    %2453 = vmatmul.mubr.f32.gmra.mrb[0].mxu0 %v2361
    %v2454 = vpop.f32.mrb[0].mxu0
    %v2455 = vadd.f32 %v2353, %v2454
    %v2456 = vpop.f32.mrb[0].mxu0
    %2457 = vmatprep.mubr.f32.mxu0 0.0
    %2458 = vmatmul.mubr.f32.gmra.mrb[0].mxu0 %v2364
    %v2459 = vpop.f32.mrb[0].mxu0
    %v2460 = vadd.f32 %v2353, %v2459
    %v2461 = vpop.f32.mrb[0].mxu0
    %2462 = vmatprep.mubr.f32.mxu0 0.0
    %2463 = vmatmul.mubr.f32.gmra.mrb[0].mxu0 %v2367
    %v2464 = vpop.f32.mrb[0].mxu0
    %v2465 = vadd.f32 %v2353, %v2464
    %v2466 = vpop.f32.mrb[0].mxu0
    %2467 = vmatprep.mubr.f32.mxu0 0.0
    %2468 = vmatmul.mubr.f32.gmra.mrb[0].mxu0 %v2370
    %v2469 = vpop.f32.mrb[0].mxu0
    %v2470 = vadd.f32 %v2353, %v2469
    %v2471 = vpop.f32.mrb[0].mxu0
    %2472 = vmatprep.mubr.f32.mxu0 0.0
    %2473 = vmatmul.mubr.f32.gmra.mrb[0].mxu0 %v2373
    %v2474 = vpop.f32.mrb[0].mxu0
    %v2475 = vadd.f32 %v2353, %v2474
    %v2476 = vpop.f32.mrb[0].mxu0
    %2477 = vmatprep.mubr.f32.mxu0 0.0
    %2478 = vmatmul.mubr.f32.gmra.mrb[0].mxu0 %v2376
    %v2479 = vpop.f32.mrb[0].mxu0
    %v2480 = vadd.f32 %v2353, %v2479
    %v2481 = vpop.f32.mrb[0].mxu0
    %2482 = vdwg.mxu0
    %v2483 = vmax.f32 %v2445, 0.0
    %v2484 = vmax.f32 %v2450, 0.0
    %v2485 = vmax.f32 %v2455, 0.0
    %v2486 = vmax.f32 %v2460, 0.0
    %v2487 = vmax.f32 %v2465, 0.0
    %v2488 = vmax.f32 %v2470, 0.0
    %v2489 = vmax.f32 %v2475, 0.0
    %v2490 = vmax.f32 %v2480, 0.0
    %v2491 = vld [vmem:[#allocation5 + $0x10] sm:$0xf]
    %v2492 = vld [vmem:[#allocation5 + $0x2c] sm:$0xf]
    %v2493 = vld [vmem:[#allocation5 + $0x48] sm:$0xf]
    %v2494 = vld [vmem:[#allocation5 + $0x64] sm:$0xf]
    %v2495 = vld [vmem:[#allocation5 + $0x80] sm:$0xf]
    %v2496 = vld [vmem:[#allocation5 + $0x9c] sm:$0xf]
    %v2497 = vld [vmem:[#allocation5 + $0xb8] sm:$0xf]
    %v2498 = vld [vmem:[#allocation5 + $0xd4] sm:$0xf]
    %v2499 = vpack.c.bf16 %v2484, %v2483
    %v2500 = vpack.c.bf16 %v2486, %v2485
    %v2501 = vpack.c.bf16 %v2488, %v2487
    %v2502 = vpack.c.bf16 %v2490, %v2489
    %v2511 = vunpack.c.l.b16 %v2491
    %v2512 = vunpack.c.l.b16 %v2492
    %v2513 = vunpack.c.l.b16 %v2493
    %v2514 = vunpack.c.l.b16 %v2494
    %v2515 = vunpack.c.l.b16 %v2495
    %v2516 = vunpack.c.l.b16 %v2496
    %v2517 = vunpack.c.l.b16 %v2497
    %v2518 = vunpack.c.l.b16 %v2498
    %v2519 = vpack.c.b16 %v2512, %v2511
    %v2520 = vpack.c.b16 %v2514, %v2513
    %v2521 = vpack.c.b16 %v2516, %v2515
    %v2522 = vpack.c.b16 %v2518, %v2517
    %v2528 = vsel %vm1261, %v2499, 0
    %v2531 = vsel %vm1261, %v2500, 0
    %v2534 = vsel %vm1261, %v2501, 0
    %v2537 = vsel %vm1261, %v2502, 0
    %2539 = vmatprep.subr.bf16.mxu0 0
    %2540 = vmatpush1.bf16.msra.mxu0 %v2519
    %2541 = vmatprep.subr.bf16.mxu0 0
    %2542 = vmatpush1.bf16.msra.mxu0 %v2520
    %2543 = vmatprep.subr.bf16.mxu0 0
    %2544 = vmatpush1.bf16.msra.mxu0 %v2521
    %2545 = vmatprep.subr.bf16.mxu0 0
    %2546 = vmatpush1.bf16.msra.mxu0 %v2522
    %2547 = vmatprep.subr.bf16.mxu0 0
    %2548 = vmatpush1.bf16.msra.mxu0 0
    %2549 = vmatprep.subr.bf16.mxu0 0
    %2550 = vmatpush1.bf16.msra.mxu0 0
    %2551 = vmatprep.subr.bf16.mxu0 0
    %2552 = vmatpush1.bf16.msra.mxu0 0
    %2553 = vmatprep.subr.bf16.mxu0 0
    %2554 = vmatpush1.bf16.msra.mxu0 0
    %2555 = vmatprep.subr.bf16.mxu0 0
    %2556 = vmatpush1.bf16.msra.mxu0 0
    %2557 = vmatprep.subr.bf16.mxu0 0
    %2558 = vmatpush1.bf16.msra.mxu0 0
    %2559 = vmatprep.subr.bf16.mxu0 0
    %2560 = vmatpush1.bf16.msra.mxu0 0
    %2561 = vmatprep.subr.bf16.mxu0 0
    %2562 = vmatpush1.bf16.msra.mxu0 0
    %2563 = vmatprep.subr.bf16.mxu0 0
    %2564 = vmatpush1.bf16.msra.mxu0 0
    %2565 = vmatprep.subr.bf16.mxu0 0
    %2566 = vmatpush1.bf16.msra.mxu0 0
    %2567 = vmatprep.subr.bf16.mxu0 0
    %2568 = vmatpush1.bf16.msra.mxu0 0
    %2569 = vmatprep.subr.bf16.mxu0 0
    %2570 = vmatpush1.bf16.msra.mxu0 0
    %2571 = vmatprep.mubr.bf16.mxu0 0
    %2572 = vmatmul.mubr.bf16.gmra.mrb[0].mxu0 %v2528
    %v2573 = vpop.f32.mrb[0].mxu0
    %v2574 = vadd.f32 0.0, %v2573
    %v2575 = vpop.f32.mrb[0].mxu0
    %v2576 = vpop.f32.mrb[0].mxu0
    %v2577 = vadd.f32 0.0, %v2576
    %v2578 = vpop.f32.mrb[0].mxu0
    %2579 = vmatprep.mubr.bf16.mxu0 0
    %2580 = vmatmul.mubr.bf16.gmra.mrb[0].mxu0 %v2531
    %v2581 = vpop.f32.mrb[0].mxu0
    %v2582 = vadd.f32 0.0, %v2581
    %v2583 = vpop.f32.mrb[0].mxu0
    %v2584 = vpop.f32.mrb[0].mxu0
    %v2585 = vadd.f32 0.0, %v2584
    %v2586 = vpop.f32.mrb[0].mxu0
    %2587 = vmatprep.mubr.bf16.mxu0 0
    %2588 = vmatmul.mubr.bf16.gmra.mrb[0].mxu0 %v2534
    %v2589 = vpop.f32.mrb[0].mxu0
    %v2590 = vadd.f32 0.0, %v2589
    %v2591 = vpop.f32.mrb[0].mxu0
    %v2592 = vpop.f32.mrb[0].mxu0
    %v2593 = vadd.f32 0.0, %v2592
    %v2594 = vpop.f32.mrb[0].mxu0
    %2595 = vmatprep.mubr.bf16.mxu0 0
    %2596 = vmatmul.mubr.bf16.gmra.mrb[0].mxu0 %v2537
    %v2597 = vpop.f32.mrb[0].mxu0
    %v2598 = vadd.f32 0.0, %v2597
    %v2599 = vpop.f32.mrb[0].mxu0
    %v2600 = vpop.f32.mrb[0].mxu0
    %v2601 = vadd.f32 0.0, %v2600
    %v2602 = vpop.f32.mrb[0].mxu0
    %2603 = vdwg.mxu0
    %v2604 = vadd.f32 %v2203, %v2574
    %v2605 = vadd.f32 %v2204, %v2577
    %v2606 = vadd.f32 %v2205, %v2582
    %v2607 = vadd.f32 %v2206, %v2585
    %v2608 = vadd.f32 %v2207, %v2590
    %v2609 = vadd.f32 %v2208, %v2593
    %v2610 = vadd.f32 %v2209, %v2598
    %v2611 = vadd.f32 %v2210, %v2601
    %v2612 = vld [vmem:[#allocation7 + $0x16] ss:$0 sm:$0xff]
    %v2613 = vadd.f32 %v2604, %v2612
    %v2614 = vadd.f32 %v2605, %v2612
    %v2615 = vadd.f32 %v2606, %v2612
    %v2616 = vadd.f32 %v2607, %v2612
    %v2617 = vadd.f32 %v2608, %v2612
    %v2618 = vadd.f32 %v2609, %v2612
    %v2619 = vadd.f32 %v2610, %v2612
    %v2620 = vadd.f32 %v2611, %v2612
    %v2621 = vld [vmem:[%s5 + $0x40] sm:$0xff]
    %v2623 = vsel %vm1261, %v2621, 0
    %2625 = vmatprep.subr.mxu0 0.0
    %2626 = vmatpush1.msra.mxu0 %v2613
    %2627 = vmatprep.subr.mxu0 0.0
    %2628 = vmatpush1.msra.mxu0 %v2614
    %2629 = vmatprep.subr.mxu0 0.0
    %2630 = vmatpush1.msra.mxu0 %v2615
    %2631 = vmatprep.subr.mxu0 0.0
    %2632 = vmatpush1.msra.mxu0 %v2616
    %2633 = vmatprep.subr.mxu0 0.0
    %2634 = vmatpush1.msra.mxu0 %v2617
    %2635 = vmatprep.subr.mxu0 0.0
    %2636 = vmatpush1.msra.mxu0 %v2618
    %2637 = vmatprep.subr.mxu0 0.0
    %2638 = vmatpush1.msra.mxu0 %v2619
    %2639 = vmatprep.subr.mxu0 0.0
    %2640 = vmatpush1.msra.mxu0 %v2620
    %2641 = vmatprep.subr.mxu0 0.0
    %2642 = vmatpush1.msra.mxu0 0.0
    %2643 = vmatprep.subr.mxu0 0.0
    %2644 = vmatpush1.msra.mxu0 0.0
    %2645 = vmatprep.subr.mxu0 0.0
    %2646 = vmatpush1.msra.mxu0 0.0
    %2647 = vmatprep.subr.mxu0 0.0
    %2648 = vmatpush1.msra.mxu0 0.0
    %2649 = vmatprep.subr.mxu0 0.0
    %2650 = vmatpush1.msra.mxu0 0.0
    %2651 = vmatprep.subr.mxu0 0.0
    %2652 = vmatpush1.msra.mxu0 0.0
    %2653 = vmatprep.subr.mxu0 0.0
    %2654 = vmatpush1.msra.mxu0 0.0
    %2655 = vmatprep.subr.mxu0 0.0
    %2656 = vmatpush1.msra.mxu0 0.0
    %2657 = vmatprep.subr.mxu0 0.0
    %2658 = vmatpush1.msra.mxu0 0.0
    %2659 = vmatprep.subr.mxu0 0.0
    %2660 = vmatpush1.msra.mxu0 0.0
    %2661 = vmatprep.subr.mxu0 0.0
    %2662 = vmatpush1.msra.mxu0 0.0
    %2663 = vmatprep.subr.mxu0 0.0
    %2664 = vmatpush1.msra.mxu0 0.0
    %2665 = vmatprep.subr.mxu0 0.0
    %2666 = vmatpush1.msra.mxu0 0.0
    %2667 = vmatprep.subr.mxu0 0.0
    %2668 = vmatpush1.msra.mxu0 0.0
    %2669 = vmatprep.subr.mxu0 0.0
    %2670 = vmatpush1.msra.mxu0 0.0
    %2671 = vmatprep.subr.mxu0 0.0
    %2672 = vmatpush1.msra.mxu0 0.0
    %2673 = vmatprep.subr.mxu0 0.0
    %2674 = vmatpush1.msra.mxu0 0.0
    %2675 = vmatprep.subr.mxu0 0.0
    %2676 = vmatpush1.msra.mxu0 0.0
    %2677 = vmatprep.subr.mxu0 0.0
    %2678 = vmatpush1.msra.mxu0 0.0
    %2679 = vmatprep.subr.mxu0 0.0
    %2680 = vmatpush1.msra.mxu0 0.0
    %2681 = vmatprep.subr.mxu0 0.0
    %2682 = vmatpush1.msra.mxu0 0.0
    %2683 = vmatprep.subr.mxu0 0.0
    %2684 = vmatpush1.msra.mxu0 0.0
    %2685 = vmatprep.subr.mxu0 0.0
    %2686 = vmatpush1.msra.mxu0 0.0
    %2687 = vmatprep.subr.mxu0 0.0
    %2688 = vmatpush1.msra.mxu0 0.0
    %2689 = vmatprep.mubr.f32.mxu0 0.0
    %2690 = vmatmul.mubr.f32.gmra.mrb[0].mxu0 %v2623
    %v2691 = vpop.f32.mrb[0].mxu0
    %v2692 = vadd.f32 0.0, %v2691
    %v2693 = vpop.f32.mrb[0].mxu0
    %2694 = vdwg.mxu0
    %v2695 = vld [vmem:[%s3 + $0x18] sm:$0xff]
    %v2696 = vld [vmem:[%s3 + $0x38] sm:$0xff]
    %v2697 = vld [vmem:[%s3 + $0x58] sm:$0xff]
    %v2698 = vld [vmem:[%s3 + $0x78] sm:$0xff]
    %v2699 = vld [vmem:[#allocation7 + $0x17] ss:$0 sm:$0xff]
    %v2701 = vsel %vm72, %v2692, 0
    %2703 = vmatprep.subr.mxu0 0.0
    %2704 = vmatpush1.msra.mxu0 %v2695
    %2705 = vmatprep.subr.mxu0 0.0
    %2706 = vmatpush1.msra.mxu0 %v2696
    %2707 = vmatprep.subr.mxu0 0.0
    %2708 = vmatpush1.msra.mxu0 %v2697
    %2709 = vmatprep.subr.mxu0 0.0
    %2710 = vmatpush1.msra.mxu0 %v2698
    %2711 = vmatprep.subr.mxu0 0.0
    %2712 = vmatpush1.msra.mxu0 0.0
    %2713 = vmatprep.subr.mxu0 0.0
    %2714 = vmatpush1.msra.mxu0 0.0
    %2715 = vmatprep.subr.mxu0 0.0
    %2716 = vmatpush1.msra.mxu0 0.0
    %2717 = vmatprep.subr.mxu0 0.0
    %2718 = vmatpush1.msra.mxu0 0.0
    %2719 = vmatprep.subr.mxu0 0.0
    %2720 = vmatpush1.msra.mxu0 0.0
    %2721 = vmatprep.subr.mxu0 0.0
    %2722 = vmatpush1.msra.mxu0 0.0
    %2723 = vmatprep.subr.mxu0 0.0
    %2724 = vmatpush1.msra.mxu0 0.0
    %2725 = vmatprep.subr.mxu0 0.0
    %2726 = vmatpush1.msra.mxu0 0.0
    %2727 = vmatprep.subr.mxu0 0.0
    %2728 = vmatpush1.msra.mxu0 0.0
    %2729 = vmatprep.subr.mxu0 0.0
    %2730 = vmatpush1.msra.mxu0 0.0
    %2731 = vmatprep.subr.mxu0 0.0
    %2732 = vmatpush1.msra.mxu0 0.0
    %2733 = vmatprep.subr.mxu0 0.0
    %2734 = vmatpush1.msra.mxu0 0.0
    %2735 = vmatprep.subr.mxu0 0.0
    %2736 = vmatpush1.msra.mxu0 0.0
    %2737 = vmatprep.subr.mxu0 0.0
    %2738 = vmatpush1.msra.mxu0 0.0
    %2739 = vmatprep.subr.mxu0 0.0
    %2740 = vmatpush1.msra.mxu0 0.0
    %2741 = vmatprep.subr.mxu0 0.0
    %2742 = vmatpush1.msra.mxu0 0.0
    %2743 = vmatprep.subr.mxu0 0.0
    %2744 = vmatpush1.msra.mxu0 0.0
    %2745 = vmatprep.subr.mxu0 0.0
    %2746 = vmatpush1.msra.mxu0 0.0
    %2747 = vmatprep.subr.mxu0 0.0
    %2748 = vmatpush1.msra.mxu0 0.0
    %2749 = vmatprep.subr.mxu0 0.0
    %2750 = vmatpush1.msra.mxu0 0.0
    %2751 = vmatprep.subr.mxu0 0.0
    %2752 = vmatpush1.msra.mxu0 0.0
    %2753 = vmatprep.subr.mxu0 0.0
    %2754 = vmatpush1.msra.mxu0 0.0
    %2755 = vmatprep.subr.mxu0 0.0
    %2756 = vmatpush1.msra.mxu0 0.0
    %2757 = vmatprep.subr.mxu0 0.0
    %2758 = vmatpush1.msra.mxu0 0.0
    %2759 = vmatprep.subr.mxu0 0.0
    %2760 = vmatpush1.msra.mxu0 0.0
    %2761 = vmatprep.subr.mxu0 0.0
    %2762 = vmatpush1.msra.mxu0 0.0
    %2763 = vmatprep.subr.mxu0 0.0
    %2764 = vmatpush1.msra.mxu0 0.0
    %2765 = vmatprep.subr.mxu0 0.0
    %2766 = vmatpush1.msra.mxu0 0.0
    %2767 = vmatprep.mubr.f32.mxu0 0.0
    %2768 = vmatmul.mubr.f32.gmra.mrb[0].mxu0 %v2701
    %v2769 = vpop.f32.mrb[0].mxu0
    %v2770 = vadd.f32 %v2699, %v2769
    %v2771 = vpop.f32.mrb[0].mxu0
    %2772 = vdwg.mxu0
    %2773 = vst [vmem:[#allocation8] sm:$0xff] %v2770
    // Predicated region
    $region38: #{tpu_custom_call.1} parent=1 // pred_check
      _
    $region39: #{tpu_custom_call.1} parent=1 // pred_check_branch
      %2775 = sbr.rel (0) target = $region41
    $region40: #{tpu_custom_call.1} parent=1 // pred_region
      %s2777 = ssub.s32 128, 128
      %2778 = vsyncadd [#allocation4], %s2777
      %s2780 = sshll.u32 [#allocation8], 4
      %s2781 = int_to_ptr.vmem [resolvable:$true] %s2780
      %2783 = dma.vmem_to_hbm [thread:$0]  %s2781, 128, %s6, [#allocation4]
    $region41: #{tpu_custom_call.1} parent=1 // pred_fallthru
      _
    // Predicated region
    $region42: #{tpu_custom_call.1} parent=1 // pred_check
      _
    $region43: #{tpu_custom_call.1} parent=1 // pred_check_branch
      %2785 = sbr.rel (0) target = $region45
    $region44: #{tpu_custom_call.1} parent=1 // pred_region
      %2786 = dma.done [#allocation4], 128
    $region45: #{tpu_custom_call.1} parent=1 // pred_fallthru
      _
    %2787 = vsyncpa [#allocation3], 1
    %2788 = vsyncpa [#allocation6], 1
    %2789 = vsyncpa [#allocation4], 1

</llo_original>
